<compile_context>
chip_gen: v7x
topology: tpu7x:2x2x1
jax: 0.10.0
libtpu: 0.0.40
codegen_flags: <defaults>
</compile_context>

<pallas_src>
import functools

import jax
import jax.numpy as jnp
from jax.experimental import pallas as pl
from jax.experimental.pallas import tpu as pltpu

_LANE = 128
_TB_QUANT = 16   # bf16 packs 16 rows per sublane tile -> keep batch tiles 16-aligned
_TB_MAX = 512


def _rup(n, m):
    return ((n + m - 1) // m) * m


def _pad2(a, rows, cols):
    return jnp.pad(a, ((0, rows - a.shape[0]), (0, cols - a.shape[1])))


def _vae_kernel(
    x_ref, eps_ref,
    w1_ref, b1_ref, w2_ref, b2_ref, w3_ref, b3_ref,
    whead_ref, bhead_ref,
    w4_ref, b4_ref, w5_ref, b5_ref, w6_ref, b6_ref,
    out_ref, head_ref,
    *, lp,
):
    f32, bf16 = jnp.float32, jnp.bfloat16

    def dense(a_bf16, w_ref, b_ref, relu=False, out_dtype=bf16):
        # bf16 MXU operands with f32 accumulation; bias add / ReLU in f32, then
        # a single cast on the way out (hidden activations stay bf16).
        y = jnp.dot(a_bf16, w_ref[...], preferred_element_type=f32) + b_ref[...]
        if relu:
            y = jnp.maximum(y, 0.0)
        return y.astype(out_dtype)

    x = x_ref[...]  # already bf16

    # ---- encoder: Linear -> ReLU -> Linear -> ReLU -> Linear ----
    h = dense(x, w1_ref, b1_ref, relu=True)
    h = dense(h, w2_ref, b2_ref, relu=True)
    h = dense(h, w3_ref, b3_ref)

    # ---- fused latent heads: single (Hp, 2*Lp) matmul, lane-aligned split ----
    head = dense(h, whead_ref, bhead_ref, out_dtype=f32)
    mu = head[:, :lp]
    logvar = head[:, lp:]  # PyTorch module calls this "var" but it is log-variance

    # ---- reparameterize: z = mu + eps * exp(0.5 * logvar) ----
    z = mu + eps_ref[...] * jnp.exp(0.5 * logvar)

    # ---- decoder: Linear -> ReLU -> Linear -> ReLU -> Linear ----
    d = dense(z.astype(bf16), w4_ref, b4_ref, relu=True)
    d = dense(d, w5_ref, b5_ref, relu=True)
    out = dense(d, w6_ref, b6_ref, out_dtype=f32)

    out_ref[...] = out
    head_ref[...] = head


def prepare_params(params):
    """Pad feature dims to lane multiples, cast weights to bf16, fuse the
    mu/var heads.  Call ONCE and reuse the returned tuple: this hoists 13
    pad/cast ops and two concats out of every forward call."""
    bf16, f32 = jnp.bfloat16, jnp.float32
    D, H = params["w1"].shape
    L = params["wmu"].shape[1]
    L2 = params["w4"].shape[1]
    Dp, Hp, Lp, L2p = (_rup(v, _LANE) for v in (D, H, L, L2))

    def w(name, r, c):
        return _pad2(params[name], r, c).astype(bf16)

    def b(name, c):
        return _pad2(params[name], 1, c).astype(f32)

    whead = jnp.concatenate(
        [_pad2(params["wmu"], Hp, Lp), _pad2(params["wvar"], Hp, Lp)], axis=1
    ).astype(bf16)
    bhead = jnp.concatenate(
        [_pad2(params["bmu"], 1, Lp), _pad2(params["bvar"], 1, Lp)], axis=1
    ).astype(f32)

    return (
        w("w1", Dp, Hp), b("b1", Hp),
        w("w2", Hp, Hp), b("b2", Hp),
        w("w3", Hp, Hp), b("b3", Hp),
        whead, bhead,
        w("w4", Lp, L2p), b("b4", L2p),
        w("w5", L2p, L2p), b("b5", L2p),
        w("w6", L2p, Dp), b("b6", Dp),
    )


@functools.partial(jax.jit, static_argnames=("single_buffer_weights",))
def _vae_forward_impl(x, eps, weights, *, single_buffer_weights=False):
    f32, bf16 = jnp.float32, jnp.bfloat16
    (w1, b1, w2, b2, w3, b3, whead, bhead, w4, b4, w5, b5, w6, b6) = weights

    B, D = x.shape
    L = eps.shape[1]
    Dp, Hp = w1.shape
    Lp, L2p = w4.shape

    # Batch tiling: >= 2 grid steps whenever B > _TB_QUANT (v7x megacore +
    # software pipelining), capped at 512 rows to amortize per-step overhead.
    TB = min(_TB_MAX, max(_TB_QUANT, _rup((B + 1) // 2, _TB_QUANT)))
    Bp = _rup(B, TB)
    grid = (Bp // TB,)

    xp = _pad2(x.astype(bf16), Bp, Dp)     # bf16 input stream (halves HBM read)
    epsp = _pad2(eps.astype(f32), Bp, Lp)

    batch_spec = lambda cols: pl.BlockSpec((TB, cols), lambda i: (i, 0))
    if single_buffer_weights:
        # Constant-index weights: DMA once, keep a single VMEM buffer.
        resident = lambda a: pl.BlockSpec(
            a.shape, lambda i: (0, 0), pipeline_mode=pl.Buffered(1))
    else:
        resident = lambda a: pl.BlockSpec(a.shape, lambda i: (0, 0))

    weight_args = (w1, b1, w2, b2, w3, b3, whead, bhead, w4, b4, w5, b5, w6, b6)
    in_specs = [batch_spec(Dp), batch_spec(Lp)] + [resident(a) for a in weight_args]
    out_specs = (batch_spec(Dp), batch_spec(2 * Lp))

    flops = 2 * Bp * (Dp * Hp + 2 * Hp * Hp + Hp * 2 * Lp
                      + Lp * L2p + L2p * L2p + L2p * Dp)
    w_bytes = sum(int(a.size) * a.dtype.itemsize for a in weight_args)
    act_bytes = (Bp * Dp * 2          # x (bf16)
                 + Bp * Lp * 4        # eps (f32)
                 + Bp * Dp * 4        # reconstruction (f32)
                 + Bp * 2 * Lp * 4)   # fused [mu | logvar] head (f32)
    cost = pl.CostEstimate(
        flops=int(flops),
        transcendentals=int(Bp * Lp),
        bytes_accessed=int(w_bytes + act_bytes),
    )

    out, head = pl.pallas_call(
        functools.partial(_vae_kernel, lp=Lp),
        grid=grid,
        in_specs=in_specs,
        out_specs=out_specs,
        out_shape=(
            jax.ShapeDtypeStruct((Bp, Dp), f32),      # reconstruction
            jax.ShapeDtypeStruct((Bp, 2 * Lp), f32),  # [mu | logvar]
        ),
        compiler_params=pltpu.CompilerParams(
            dimension_semantics=("parallel",),
            vmem_limit_bytes=32 * 1024 * 1024,
        ),
        cost_estimate=cost,
    )(xp, epsp, *weight_args)

    return out[:B, :D], head[:B, :L], head[:B, Lp:Lp + L]


# Prefer single-buffered weight specs; fall back once (and remember) if the
# running JAX does not support pipeline_mode on pallas_call BlockSpecs.
_single_buffer_weights_ok = hasattr(pl, "Buffered")


def vae_forward(x, eps, prepared_weights):
    """VAE forward pass.

    x:   (B, input_dim)  float32
    eps: (B, latent_dim) float32  (the randn_like noise from reparameterize)
    prepared_weights: output of prepare_params(params)  (call once, reuse)
    Returns (reconstruction, mu, log_var) at logical shapes.
    """
    global _single_buffer_weights_ok
    if _single_buffer_weights_ok:
        try:
            return _vae_forward_impl(x, eps, prepared_weights,
                                     single_buffer_weights=True)
        except Exception:
            # pipeline_mode / Buffered(1) unsupported in this JAX build.
            _single_buffer_weights_ok = False
    return _vae_forward_impl(x, eps, prepared_weights,
                             single_buffer_weights=False)


def init_params(key, input_dim, latent_dim):
    """Deterministic parameter init matching the shapes of the PyTorch module."""
    H = input_dim // 2
    L2 = latent_dim // 2

    shapes = {
        "w1": (input_dim, H), "b1": (1, H),
        "w2": (H, H),         "b2": (1, H),
        "w3": (H, H),         "b3": (1, H),
        "wmu": (H, latent_dim),  "bmu": (1, latent_dim),
        "wvar": (H, latent_dim), "bvar": (1, latent_dim),
        "w4": (latent_dim, L2), "b4": (1, L2),
        "w5": (L2, L2),         "b5": (1, L2),
        "w6": (L2, input_dim),  "b6": (1, input_dim),
    }
    params = {}
    keys = jax.random.split(key, len(shapes))
    for k, (name, shp) in zip(keys, sorted(shapes.items())):
        fan_in = shp[0] if len(shp) == 2 and shp[0] > 1 else max(shp[-1], 1)
        scale = 1.0 / jnp.sqrt(jnp.float32(fan_in))
        params[name] = jax.random.uniform(k, shp, jnp.float32, -1.0, 1.0) * scale
    return params


def _reference_forward(x, eps, p):
    """Pure-JAX reference mirroring the kernel numerics (bf16 MXU operands,
    f32 accumulation, bf16 hidden activations, f32 heads/outputs)."""
    f32, bf16 = jnp.float32, jnp.bfloat16

    def dense(a, w, b, relu=False, out_dtype=bf16):
        y = jnp.dot(a.astype(bf16), w.astype(bf16), preferred_element_type=f32) + b
        if relu:
            y = jnp.maximum(y, 0.0)
        return y.astype(out_dtype)

    h = dense(x, p["w1"], p["b1"], True)
    h = dense(h, p["w2"], p["b2"], True)
    h = dense(h, p["w3"], p["b3"])
    mu = dense(h, p["wmu"], p["bmu"], out_dtype=f32)
    logvar = dense(h, p["wvar"], p["bvar"], out_dtype=f32)
    z = (mu + eps * jnp.exp(0.5 * logvar)).astype(bf16)
    d = dense(z, p["w4"], p["b4"], True)
    d = dense(d, p["w5"], p["b5"], True)
    out = dense(d, p["w6"], p["b6"], out_dtype=f32)
    return out, mu, logvar


if __name__ == "__main__":
    # Small shapes consistent with the module (original: input_dim=784, latent_dim=50).
    batch = 8
    input_dim = 64
    latent_dim = 16

    key = jax.random.PRNGKey(0)
    k_params, k_x, k_eps = jax.random.split(key, 3)

    params = init_params(k_params, input_dim, latent_dim)
    prepared = prepare_params(params)   # hoisted: pad/cast/fuse weights ONCE

    x = jax.random.normal(k_x, (batch, input_dim), jnp.float32)
    eps = jax.random.normal(k_eps, (batch, latent_dim), jnp.float32)

    out, mu, logvar = vae_forward(x, eps, prepared)
    jax.block_until_ready((out, mu, logvar))

    ref_out, ref_mu, ref_var = _reference_forward(x, eps, params)
    assert out.shape == (batch, input_dim)
    assert mu.shape == (batch, latent_dim) and logvar.shape == (batch, latent_dim)
    assert jnp.allclose(out, ref_out, atol=2e-2, rtol=2e-2)
    assert jnp.allclose(mu, ref_mu, atol=2e-2, rtol=2e-2)
    assert jnp.allclose(logvar, ref_var, atol=2e-2, rtol=2e-2)

    print("KERNEL_OK")
</pallas_src>

<mosaic_0001>
module attributes {stable_mosaic.version = 11 : i64} {
  func.func @_vae_kernel(%arg0: i32, %arg1: memref<16x128xbf16, #tpu.memory_space<vmem>>, %arg2: memref<16x128xf32, #tpu.memory_space<vmem>>, %arg3: memref<128x128xbf16, #tpu.memory_space<vmem>>, %arg4: memref<1x128xf32, #tpu.memory_space<vmem>>, %arg5: memref<128x128xbf16, #tpu.memory_space<vmem>>, %arg6: memref<1x128xf32, #tpu.memory_space<vmem>>, %arg7: memref<128x128xbf16, #tpu.memory_space<vmem>>, %arg8: memref<1x128xf32, #tpu.memory_space<vmem>>, %arg9: memref<128x256xbf16, #tpu.memory_space<vmem>>, %arg10: memref<1x256xf32, #tpu.memory_space<vmem>>, %arg11: memref<128x128xbf16, #tpu.memory_space<vmem>>, %arg12: memref<1x128xf32, #tpu.memory_space<vmem>>, %arg13: memref<128x128xbf16, #tpu.memory_space<vmem>>, %arg14: memref<1x128xf32, #tpu.memory_space<vmem>>, %arg15: memref<128x128xbf16, #tpu.memory_space<vmem>>, %arg16: memref<1x128xf32, #tpu.memory_space<vmem>>, %arg17: memref<16x128xf32, #tpu.memory_space<vmem>>, %arg18: memref<16x256xf32, #tpu.memory_space<vmem>>) attributes {dimension_semantics = [#tpu.dimension_semantics<parallel>], iteration_bounds = array<i64: 1>, scalar_prefetch = 0 : i64, scratch_operands = 0 : i64, tpu.core_type = #tpu.core_type<tc>, window_params = [{transform_indices = @transform_0, window_bounds = array<i64: 16, 128>}, {transform_indices = @transform_1, window_bounds = array<i64: 16, 128>}, {pipeline_mode = #tpu.pipeline_mode<synchronous>, transform_indices = @transform_2, window_bounds = array<i64: 128, 128>}, {pipeline_mode = #tpu.pipeline_mode<synchronous>, transform_indices = @transform_3, window_bounds = array<i64: 1, 128>}, {pipeline_mode = #tpu.pipeline_mode<synchronous>, transform_indices = @transform_4, window_bounds = array<i64: 128, 128>}, {pipeline_mode = #tpu.pipeline_mode<synchronous>, transform_indices = @transform_5, window_bounds = array<i64: 1, 128>}, {pipeline_mode = #tpu.pipeline_mode<synchronous>, transform_indices = @transform_6, window_bounds = array<i64: 128, 128>}, {pipeline_mode = #tpu.pipeline_mode<synchronous>, transform_indices = @transform_7, window_bounds = array<i64: 1, 128>}, {pipeline_mode = #tpu.pipeline_mode<synchronous>, transform_indices = @transform_8, window_bounds = array<i64: 128, 256>}, {pipeline_mode = #tpu.pipeline_mode<synchronous>, transform_indices = @transform_9, window_bounds = array<i64: 1, 256>}, {pipeline_mode = #tpu.pipeline_mode<synchronous>, transform_indices = @transform_10, window_bounds = array<i64: 128, 128>}, {pipeline_mode = #tpu.pipeline_mode<synchronous>, transform_indices = @transform_11, window_bounds = array<i64: 1, 128>}, {pipeline_mode = #tpu.pipeline_mode<synchronous>, transform_indices = @transform_12, window_bounds = array<i64: 128, 128>}, {pipeline_mode = #tpu.pipeline_mode<synchronous>, transform_indices = @transform_13, window_bounds = array<i64: 1, 128>}, {pipeline_mode = #tpu.pipeline_mode<synchronous>, transform_indices = @transform_14, window_bounds = array<i64: 128, 128>}, {pipeline_mode = #tpu.pipeline_mode<synchronous>, transform_indices = @transform_15, window_bounds = array<i64: 1, 128>}, {transform_indices = @transform_16, window_bounds = array<i64: 16, 128>}, {transform_indices = @transform_17, window_bounds = array<i64: 16, 256>}]} {
    %c0 = arith.constant 0 : index
    %c0_0 = arith.constant 0 : index
    %0 = vector.load %arg1[%c0, %c0_0] : memref<16x128xbf16, #tpu.memory_space<vmem>>, vector<16x128xbf16>
    %c0_1 = arith.constant 0 : index
    %c0_2 = arith.constant 0 : index
    %1 = vector.load %arg3[%c0_1, %c0_2] : memref<128x128xbf16, #tpu.memory_space<vmem>>, vector<128x128xbf16>
    %cst = arith.constant dense<0.000000e+00> : vector<16x128xf32>
    %2 = tpu.matmul %0, %1, %cst {dimension_numbers = #tpu.dot_dimension_numbers<[1], [0], [0], [1], [0, 0, 1, 1], [], []>} : vector<16x128xbf16>, vector<128x128xbf16>, vector<16x128xf32> -> vector<16x128xf32>
    %c0_3 = arith.constant 0 : index
    %c0_4 = arith.constant 0 : index
    %3 = vector.load %arg4[%c0_3, %c0_4] : memref<1x128xf32, #tpu.memory_space<vmem>>, vector<1x128xf32>
    %4 = vector.broadcast %3 : vector<1x128xf32> to vector<16x128xf32>
    %5 = arith.addf %2, %4 : vector<16x128xf32>
    %cst_5 = arith.constant 0.000000e+00 : f32
    %6 = vector.broadcast %cst_5 : f32 to vector<16x128xf32>
    %7 = arith.maximumf %5, %6 : vector<16x128xf32>
    %8 = arith.truncf %7 : vector<16x128xf32> to vector<16x128xbf16>
    %c0_6 = arith.constant 0 : index
    %c0_7 = arith.constant 0 : index
    %9 = vector.load %arg5[%c0_6, %c0_7] : memref<128x128xbf16, #tpu.memory_space<vmem>>, vector<128x128xbf16>
    %cst_8 = arith.constant dense<0.000000e+00> : vector<16x128xf32>
    %10 = tpu.matmul %8, %9, %cst_8 {dimension_numbers = #tpu.dot_dimension_numbers<[1], [0], [0], [1], [0, 0, 1, 1], [], []>} : vector<16x128xbf16>, vector<128x128xbf16>, vector<16x128xf32> -> vector<16x128xf32>
    %c0_9 = arith.constant 0 : index
    %c0_10 = arith.constant 0 : index
    %11 = vector.load %arg6[%c0_9, %c0_10] : memref<1x128xf32, #tpu.memory_space<vmem>>, vector<1x128xf32>
    %12 = vector.broadcast %11 : vector<1x128xf32> to vector<16x128xf32>
    %13 = arith.addf %10, %12 : vector<16x128xf32>
    %cst_11 = arith.constant 0.000000e+00 : f32
    %14 = vector.broadcast %cst_11 : f32 to vector<16x128xf32>
    %15 = arith.maximumf %13, %14 : vector<16x128xf32>
    %16 = arith.truncf %15 : vector<16x128xf32> to vector<16x128xbf16>
    %c0_12 = arith.constant 0 : index
    %c0_13 = arith.constant 0 : index
    %17 = vector.load %arg7[%c0_12, %c0_13] : memref<128x128xbf16, #tpu.memory_space<vmem>>, vector<128x128xbf16>
    %cst_14 = arith.constant dense<0.000000e+00> : vector<16x128xf32>
    %18 = tpu.matmul %16, %17, %cst_14 {dimension_numbers = #tpu.dot_dimension_numbers<[1], [0], [0], [1], [0, 0, 1, 1], [], []>} : vector<16x128xbf16>, vector<128x128xbf16>, vector<16x128xf32> -> vector<16x128xf32>
    %c0_15 = arith.constant 0 : index
    %c0_16 = arith.constant 0 : index
    %19 = vector.load %arg8[%c0_15, %c0_16] : memref<1x128xf32, #tpu.memory_space<vmem>>, vector<1x128xf32>
    %20 = vector.broadcast %19 : vector<1x128xf32> to vector<16x128xf32>
    %21 = arith.addf %18, %20 : vector<16x128xf32>
    %22 = arith.truncf %21 : vector<16x128xf32> to vector<16x128xbf16>
    %c0_17 = arith.constant 0 : index
    %c0_18 = arith.constant 0 : index
    %23 = vector.load %arg9[%c0_17, %c0_18] : memref<128x256xbf16, #tpu.memory_space<vmem>>, vector<128x256xbf16>
    %cst_19 = arith.constant dense<0.000000e+00> : vector<16x256xf32>
    %24 = tpu.matmul %22, %23, %cst_19 {dimension_numbers = #tpu.dot_dimension_numbers<[1], [0], [0], [1], [0, 0, 1, 1], [], []>} : vector<16x128xbf16>, vector<128x256xbf16>, vector<16x256xf32> -> vector<16x256xf32>
    %c0_20 = arith.constant 0 : index
    %c0_21 = arith.constant 0 : index
    %25 = vector.load %arg10[%c0_20, %c0_21] : memref<1x256xf32, #tpu.memory_space<vmem>>, vector<1x256xf32>
    %26 = vector.broadcast %25 : vector<1x256xf32> to vector<16x256xf32>
    %27 = arith.addf %24, %26 : vector<16x256xf32>
    %28 = vector.extract_strided_slice %27 {offsets = [0, 0], sizes = [16, 128], strides = [1, 1]} : vector<16x256xf32> to vector<16x128xf32>
    %29 = vector.extract_strided_slice %27 {offsets = [0, 128], sizes = [16, 128], strides = [1, 1]} : vector<16x256xf32> to vector<16x128xf32>
    %c0_22 = arith.constant 0 : index
    %c0_23 = arith.constant 0 : index
    %30 = vector.load %arg2[%c0_22, %c0_23] : memref<16x128xf32, #tpu.memory_space<vmem>>, vector<16x128xf32>
    %cst_24 = arith.constant 5.000000e-01 : f32
    %31 = vector.broadcast %cst_24 : f32 to vector<16x128xf32>
    %32 = arith.mulf %31, %29 : vector<16x128xf32>
    %33 = math.exp %32 : vector<16x128xf32>
    %34 = arith.mulf %30, %33 : vector<16x128xf32>
    %35 = arith.addf %28, %34 : vector<16x128xf32>
    %36 = arith.truncf %35 : vector<16x128xf32> to vector<16x128xbf16>
    %c0_25 = arith.constant 0 : index
    %c0_26 = arith.constant 0 : index
    %37 = vector.load %arg11[%c0_25, %c0_26] : memref<128x128xbf16, #tpu.memory_space<vmem>>, vector<128x128xbf16>
    %cst_27 = arith.constant dense<0.000000e+00> : vector<16x128xf32>
    %38 = tpu.matmul %36, %37, %cst_27 {dimension_numbers = #tpu.dot_dimension_numbers<[1], [0], [0], [1], [0, 0, 1, 1], [], []>} : vector<16x128xbf16>, vector<128x128xbf16>, vector<16x128xf32> -> vector<16x128xf32>
    %c0_28 = arith.constant 0 : index
    %c0_29 = arith.constant 0 : index
    %39 = vector.load %arg12[%c0_28, %c0_29] : memref<1x128xf32, #tpu.memory_space<vmem>>, vector<1x128xf32>
    %40 = vector.broadcast %39 : vector<1x128xf32> to vector<16x128xf32>
    %41 = arith.addf %38, %40 : vector<16x128xf32>
    %cst_30 = arith.constant 0.000000e+00 : f32
    %42 = vector.broadcast %cst_30 : f32 to vector<16x128xf32>
    %43 = arith.maximumf %41, %42 : vector<16x128xf32>
    %44 = arith.truncf %43 : vector<16x128xf32> to vector<16x128xbf16>
    %c0_31 = arith.constant 0 : index
    %c0_32 = arith.constant 0 : index
    %45 = vector.load %arg13[%c0_31, %c0_32] : memref<128x128xbf16, #tpu.memory_space<vmem>>, vector<128x128xbf16>
    %cst_33 = arith.constant dense<0.000000e+00> : vector<16x128xf32>
    %46 = tpu.matmul %44, %45, %cst_33 {dimension_numbers = #tpu.dot_dimension_numbers<[1], [0], [0], [1], [0, 0, 1, 1], [], []>} : vector<16x128xbf16>, vector<128x128xbf16>, vector<16x128xf32> -> vector<16x128xf32>
    %c0_34 = arith.constant 0 : index
    %c0_35 = arith.constant 0 : index
    %47 = vector.load %arg14[%c0_34, %c0_35] : memref<1x128xf32, #tpu.memory_space<vmem>>, vector<1x128xf32>
    %48 = vector.broadcast %47 : vector<1x128xf32> to vector<16x128xf32>
    %49 = arith.addf %46, %48 : vector<16x128xf32>
    %cst_36 = arith.constant 0.000000e+00 : f32
    %50 = vector.broadcast %cst_36 : f32 to vector<16x128xf32>
    %51 = arith.maximumf %49, %50 : vector<16x128xf32>
    %52 = arith.truncf %51 : vector<16x128xf32> to vector<16x128xbf16>
    %c0_37 = arith.constant 0 : index
    %c0_38 = arith.constant 0 : index
    %53 = vector.load %arg15[%c0_37, %c0_38] : memref<128x128xbf16, #tpu.memory_space<vmem>>, vector<128x128xbf16>
    %cst_39 = arith.constant dense<0.000000e+00> : vector<16x128xf32>
    %54 = tpu.matmul %52, %53, %cst_39 {dimension_numbers = #tpu.dot_dimension_numbers<[1], [0], [0], [1], [0, 0, 1, 1], [], []>} : vector<16x128xbf16>, vector<128x128xbf16>, vector<16x128xf32> -> vector<16x128xf32>
    %c0_40 = arith.constant 0 : index
    %c0_41 = arith.constant 0 : index
    %55 = vector.load %arg16[%c0_40, %c0_41] : memref<1x128xf32, #tpu.memory_space<vmem>>, vector<1x128xf32>
    %56 = vector.broadcast %55 : vector<1x128xf32> to vector<16x128xf32>
    %57 = arith.addf %54, %56 : vector<16x128xf32>
    %c0_42 = arith.constant 0 : index
    %c0_43 = arith.constant 0 : index
    %58 = vector.load %arg17[%c0_42, %c0_43] : memref<16x128xf32, #tpu.memory_space<vmem>>, vector<16x128xf32>
    tpu.vector_store %arg17[%c0_42, %c0_43], %57 {strides = array<i32>} : memref<16x128xf32, #tpu.memory_space<vmem>>, vector<16x128xf32>,
    %c0_44 = arith.constant 0 : index
    %c0_45 = arith.constant 0 : index
    %59 = vector.load %arg18[%c0_44, %c0_45] : memref<16x256xf32, #tpu.memory_space<vmem>>, vector<16x256xf32>
    tpu.vector_store %arg18[%c0_44, %c0_45], %27 {strides = array<i32>} : memref<16x256xf32, #tpu.memory_space<vmem>>, vector<16x256xf32>,
    return
  }
  func.func @transform_0(%arg0: i32) -> (i32, i32) {
    %c0_i32 = arith.constant 0 : i32
    %c0_i32_0 = arith.constant 0 : i32
    return %arg0, %c0_i32 : i32, i32
  }
  func.func @transform_1(%arg0: i32) -> (i32, i32) {
    %c0_i32 = arith.constant 0 : i32
    %c0_i32_0 = arith.constant 0 : i32
    return %arg0, %c0_i32 : i32, i32
  }
  func.func @transform_2(%arg0: i32) -> (i32, i32) {
    %c0_i32 = arith.constant 0 : i32
    %c0_i32_0 = arith.constant 0 : i32
    %c0_i32_1 = arith.constant 0 : i32
    return %c0_i32, %c0_i32_0 : i32, i32
  }
  func.func @transform_3(%arg0: i32) -> (i32, i32) {
    %c0_i32 = arith.constant 0 : i32
    %c0_i32_0 = arith.constant 0 : i32
    %c0_i32_1 = arith.constant 0 : i32
    return %c0_i32, %c0_i32_0 : i32, i32
  }
  func.func @transform_4(%arg0: i32) -> (i32, i32) {
    %c0_i32 = arith.constant 0 : i32
    %c0_i32_0 = arith.constant 0 : i32
    %c0_i32_1 = arith.constant 0 : i32
    return %c0_i32, %c0_i32_0 : i32, i32
  }
  func.func @transform_5(%arg0: i32) -> (i32, i32) {
    %c0_i32 = arith.constant 0 : i32
    %c0_i32_0 = arith.constant 0 : i32
    %c0_i32_1 = arith.constant 0 : i32
    return %c0_i32, %c0_i32_0 : i32, i32
  }
  func.func @transform_6(%arg0: i32) -> (i32, i32) {
    %c0_i32 = arith.constant 0 : i32
    %c0_i32_0 = arith.constant 0 : i32
    %c0_i32_1 = arith.constant 0 : i32
    return %c0_i32, %c0_i32_0 : i32, i32
  }
  func.func @transform_7(%arg0: i32) -> (i32, i32) {
    %c0_i32 = arith.constant 0 : i32
    %c0_i32_0 = arith.constant 0 : i32
    %c0_i32_1 = arith.constant 0 : i32
    return %c0_i32, %c0_i32_0 : i32, i32
  }
  func.func @transform_8(%arg0: i32) -> (i32, i32) {
    %c0_i32 = arith.constant 0 : i32
    %c0_i32_0 = arith.constant 0 : i32
    %c0_i32_1 = arith.constant 0 : i32
    return %c0_i32, %c0_i32_0 : i32, i32
  }
  func.func @transform_9(%arg0: i32) -> (i32, i32) {
    %c0_i32 = arith.constant 0 : i32
    %c0_i32_0 = arith.constant 0 : i32
    %c0_i32_1 = arith.constant 0 : i32
    return %c0_i32, %c0_i32_0 : i32, i32
  }
  func.func @transform_10(%arg0: i32) -> (i32, i32) {
    %c0_i32 = arith.constant 0 : i32
    %c0_i32_0 = arith.constant 0 : i32
    %c0_i32_1 = arith.constant 0 : i32
    return %c0_i32, %c0_i32_0 : i32, i32
  }
  func.func @transform_11(%arg0: i32) -> (i32, i32) {
    %c0_i32 = arith.constant 0 : i32
    %c0_i32_0 = arith.constant 0 : i32
    %c0_i32_1 = arith.constant 0 : i32
    return %c0_i32, %c0_i32_0 : i32, i32
  }
  func.func @transform_12(%arg0: i32) -> (i32, i32) {
    %c0_i32 = arith.constant 0 : i32
    %c0_i32_0 = arith.constant 0 : i32
    %c0_i32_1 = arith.constant 0 : i32
    return %c0_i32, %c0_i32_0 : i32, i32
  }
  func.func @transform_13(%arg0: i32) -> (i32, i32) {
    %c0_i32 = arith.constant 0 : i32
    %c0_i32_0 = arith.constant 0 : i32
    %c0_i32_1 = arith.constant 0 : i32
    return %c0_i32, %c0_i32_0 : i32, i32
  }
  func.func @transform_14(%arg0: i32) -> (i32, i32) {
    %c0_i32 = arith.constant 0 : i32
    %c0_i32_0 = arith.constant 0 : i32
    %c0_i32_1 = arith.constant 0 : i32
    return %c0_i32, %c0_i32_0 : i32, i32
  }
  func.func @transform_15(%arg0: i32) -> (i32, i32) {
    %c0_i32 = arith.constant 0 : i32
    %c0_i32_0 = arith.constant 0 : i32
    %c0_i32_1 = arith.constant 0 : i32
    return %c0_i32, %c0_i32_0 : i32, i32
  }
  func.func @transform_16(%arg0: i32) -> (i32, i32) {
    %c0_i32 = arith.constant 0 : i32
    %c0_i32_0 = arith.constant 0 : i32
    return %arg0, %c0_i32 : i32, i32
  }
  func.func @transform_17(%arg0: i32) -> (i32, i32) {
    %c0_i32 = arith.constant 0 : i32
    %c0_i32_0 = arith.constant 0 : i32
    return %arg0, %c0_i32 : i32, i32
  }
}

module attributes {stable_mosaic.version = 11 : i64} {
  func.func @_vae_kernel(%arg0: i32, %arg1: memref<16x128xbf16, #tpu.memory_space<vmem>>, %arg2: memref<16x128xf32, #tpu.memory_space<vmem>>, %arg3: memref<128x128xbf16, #tpu.memory_space<vmem>>, %arg4: memref<1x128xf32, #tpu.memory_space<vmem>>, %arg5: memref<128x128xbf16, #tpu.memory_space<vmem>>, %arg6: memref<1x128xf32, #tpu.memory_space<vmem>>, %arg7: memref<128x128xbf16, #tpu.memory_space<vmem>>, %arg8: memref<1x128xf32, #tpu.memory_space<vmem>>, %arg9: memref<128x256xbf16, #tpu.memory_space<vmem>>, %arg10: memref<1x256xf32, #tpu.memory_space<vmem>>, %arg11: memref<128x128xbf16, #tpu.memory_space<vmem>>, %arg12: memref<1x128xf32, #tpu.memory_space<vmem>>, %arg13: memref<128x128xbf16, #tpu.memory_space<vmem>>, %arg14: memref<1x128xf32, #tpu.memory_space<vmem>>, %arg15: memref<128x128xbf16, #tpu.memory_space<vmem>>, %arg16: memref<1x128xf32, #tpu.memory_space<vmem>>, %arg17: memref<16x128xf32, #tpu.memory_space<vmem>>, %arg18: memref<16x256xf32, #tpu.memory_space<vmem>>) attributes {dimension_semantics = [#tpu.dimension_semantics<parallel>], iteration_bounds = array<i64: 1>, scalar_prefetch = 0 : i64, scratch_operands = 0 : i64, tpu.core_type = #tpu.core_type<tc>, window_params = [{transform_indices = @transform_0, window_bounds = array<i64: 16, 128>}, {transform_indices = @transform_1, window_bounds = array<i64: 16, 128>}, {pipeline_mode = #tpu.pipeline_mode<synchronous>, transform_indices = @transform_2, window_bounds = array<i64: 128, 128>}, {pipeline_mode = #tpu.pipeline_mode<synchronous>, transform_indices = @transform_3, window_bounds = array<i64: 1, 128>}, {pipeline_mode = #tpu.pipeline_mode<synchronous>, transform_indices = @transform_4, window_bounds = array<i64: 128, 128>}, {pipeline_mode = #tpu.pipeline_mode<synchronous>, transform_indices = @transform_5, window_bounds = array<i64: 1, 128>}, {pipeline_mode = #tpu.pipeline_mode<synchronous>, transform_indices = @transform_6, window_bounds = array<i64: 128, 128>}, {pipeline_mode = #tpu.pipeline_mode<synchronous>, transform_indices = @transform_7, window_bounds = array<i64: 1, 128>}, {pipeline_mode = #tpu.pipeline_mode<synchronous>, transform_indices = @transform_8, window_bounds = array<i64: 128, 256>}, {pipeline_mode = #tpu.pipeline_mode<synchronous>, transform_indices = @transform_9, window_bounds = array<i64: 1, 256>}, {pipeline_mode = #tpu.pipeline_mode<synchronous>, transform_indices = @transform_10, window_bounds = array<i64: 128, 128>}, {pipeline_mode = #tpu.pipeline_mode<synchronous>, transform_indices = @transform_11, window_bounds = array<i64: 1, 128>}, {pipeline_mode = #tpu.pipeline_mode<synchronous>, transform_indices = @transform_12, window_bounds = array<i64: 128, 128>}, {pipeline_mode = #tpu.pipeline_mode<synchronous>, transform_indices = @transform_13, window_bounds = array<i64: 1, 128>}, {pipeline_mode = #tpu.pipeline_mode<synchronous>, transform_indices = @transform_14, window_bounds = array<i64: 128, 128>}, {pipeline_mode = #tpu.pipeline_mode<synchronous>, transform_indices = @transform_15, window_bounds = array<i64: 1, 128>}, {transform_indices = @transform_16, window_bounds = array<i64: 16, 128>}, {transform_indices = @transform_17, window_bounds = array<i64: 16, 256>}]} {
    %c0 = arith.constant 0 : index
    %c0_0 = arith.constant 0 : index
    %0 = vector.load %arg1[%c0, %c0_0] : memref<16x128xbf16, #tpu.memory_space<vmem>>, vector<16x128xbf16>
    %c0_1 = arith.constant 0 : index
    %c0_2 = arith.constant 0 : index
    %1 = vector.load %arg3[%c0_1, %c0_2] : memref<128x128xbf16, #tpu.memory_space<vmem>>, vector<128x128xbf16>
    %cst = arith.constant dense<0.000000e+00> : vector<16x128xf32>
    %2 = tpu.matmul %0, %1, %cst {dimension_numbers = #tpu.dot_dimension_numbers<[1], [0], [0], [1], [0, 0, 1, 1], [], []>} : vector<16x128xbf16>, vector<128x128xbf16>, vector<16x128xf32> -> vector<16x128xf32>
    %c0_3 = arith.constant 0 : index
    %c0_4 = arith.constant 0 : index
    %3 = vector.load %arg4[%c0_3, %c0_4] : memref<1x128xf32, #tpu.memory_space<vmem>>, vector<1x128xf32>
    %4 = vector.broadcast %3 : vector<1x128xf32> to vector<16x128xf32>
    %5 = arith.addf %2, %4 : vector<16x128xf32>
    %cst_5 = arith.constant 0.000000e+00 : f32
    %6 = vector.broadcast %cst_5 : f32 to vector<16x128xf32>
    %7 = arith.maximumf %5, %6 : vector<16x128xf32>
    %8 = arith.truncf %7 : vector<16x128xf32> to vector<16x128xbf16>
    %c0_6 = arith.constant 0 : index
    %c0_7 = arith.constant 0 : index
    %9 = vector.load %arg5[%c0_6, %c0_7] : memref<128x128xbf16, #tpu.memory_space<vmem>>, vector<128x128xbf16>
    %cst_8 = arith.constant dense<0.000000e+00> : vector<16x128xf32>
    %10 = tpu.matmul %8, %9, %cst_8 {dimension_numbers = #tpu.dot_dimension_numbers<[1], [0], [0], [1], [0, 0, 1, 1], [], []>} : vector<16x128xbf16>, vector<128x128xbf16>, vector<16x128xf32> -> vector<16x128xf32>
    %c0_9 = arith.constant 0 : index
    %c0_10 = arith.constant 0 : index
    %11 = vector.load %arg6[%c0_9, %c0_10] : memref<1x128xf32, #tpu.memory_space<vmem>>, vector<1x128xf32>
    %12 = vector.broadcast %11 : vector<1x128xf32> to vector<16x128xf32>
    %13 = arith.addf %10, %12 : vector<16x128xf32>
    %cst_11 = arith.constant 0.000000e+00 : f32
    %14 = vector.broadcast %cst_11 : f32 to vector<16x128xf32>
    %15 = arith.maximumf %13, %14 : vector<16x128xf32>
    %16 = arith.truncf %15 : vector<16x128xf32> to vector<16x128xbf16>
    %c0_12 = arith.constant 0 : index
    %c0_13 = arith.constant 0 : index
    %17 = vector.load %arg7[%c0_12, %c0_13] : memref<128x128xbf16, #tpu.memory_space<vmem>>, vector<128x128xbf16>
    %cst_14 = arith.constant dense<0.000000e+00> : vector<16x128xf32>
    %18 = tpu.matmul %16, %17, %cst_14 {dimension_numbers = #tpu.dot_dimension_numbers<[1], [0], [0], [1], [0, 0, 1, 1], [], []>} : vector<16x128xbf16>, vector<128x128xbf16>, vector<16x128xf32> -> vector<16x128xf32>
    %c0_15 = arith.constant 0 : index
    %c0_16 = arith.constant 0 : index
    %19 = vector.load %arg8[%c0_15, %c0_16] : memref<1x128xf32, #tpu.memory_space<vmem>>, vector<1x128xf32>
    %20 = vector.broadcast %19 : vector<1x128xf32> to vector<16x128xf32>
    %21 = arith.addf %18, %20 : vector<16x128xf32>
    %22 = arith.truncf %21 : vector<16x128xf32> to vector<16x128xbf16>
    %c0_17 = arith.constant 0 : index
    %c0_18 = arith.constant 0 : index
    %23 = vector.load %arg9[%c0_17, %c0_18] : memref<128x256xbf16, #tpu.memory_space<vmem>>, vector<128x256xbf16>
    %cst_19 = arith.constant dense<0.000000e+00> : vector<16x256xf32>
    %24 = tpu.matmul %22, %23, %cst_19 {dimension_numbers = #tpu.dot_dimension_numbers<[1], [0], [0], [1], [0, 0, 1, 1], [], []>} : vector<16x128xbf16>, vector<128x256xbf16>, vector<16x256xf32> -> vector<16x256xf32>
    %c0_20 = arith.constant 0 : index
    %c0_21 = arith.constant 0 : index
    %25 = vector.load %arg10[%c0_20, %c0_21] : memref<1x256xf32, #tpu.memory_space<vmem>>, vector<1x256xf32>
    %26 = vector.broadcast %25 : vector<1x256xf32> to vector<16x256xf32>
    %27 = arith.addf %24, %26 : vector<16x256xf32>
    %28 = vector.extract_strided_slice %27 {offsets = [0, 0], sizes = [16, 128], strides = [1, 1]} : vector<16x256xf32> to vector<16x128xf32>
    %29 = vector.extract_strided_slice %27 {offsets = [0, 128], sizes = [16, 128], strides = [1, 1]} : vector<16x256xf32> to vector<16x128xf32>
    %c0_22 = arith.constant 0 : index
    %c0_23 = arith.constant 0 : index
    %30 = vector.load %arg2[%c0_22, %c0_23] : memref<16x128xf32, #tpu.memory_space<vmem>>, vector<16x128xf32>
    %cst_24 = arith.constant 5.000000e-01 : f32
    %31 = vector.broadcast %cst_24 : f32 to vector<16x128xf32>
    %32 = arith.mulf %31, %29 : vector<16x128xf32>
    %33 = math.exp %32 : vector<16x128xf32>
    %34 = arith.mulf %30, %33 : vector<16x128xf32>
    %35 = arith.addf %28, %34 : vector<16x128xf32>
    %36 = arith.truncf %35 : vector<16x128xf32> to vector<16x128xbf16>
    %c0_25 = arith.constant 0 : index
    %c0_26 = arith.constant 0 : index
    %37 = vector.load %arg11[%c0_25, %c0_26] : memref<128x128xbf16, #tpu.memory_space<vmem>>, vector<128x128xbf16>
    %cst_27 = arith.constant dense<0.000000e+00> : vector<16x128xf32>
    %38 = tpu.matmul %36, %37, %cst_27 {dimension_numbers = #tpu.dot_dimension_numbers<[1], [0], [0], [1], [0, 0, 1, 1], [], []>} : vector<16x128xbf16>, vector<128x128xbf16>, vector<16x128xf32> -> vector<16x128xf32>
    %c0_28 = arith.constant 0 : index
    %c0_29 = arith.constant 0 : index
    %39 = vector.load %arg12[%c0_28, %c0_29] : memref<1x128xf32, #tpu.memory_space<vmem>>, vector<1x128xf32>
    %40 = vector.broadcast %39 : vector<1x128xf32> to vector<16x128xf32>
    %41 = arith.addf %38, %40 : vector<16x128xf32>
    %cst_30 = arith.constant 0.000000e+00 : f32
    %42 = vector.broadcast %cst_30 : f32 to vector<16x128xf32>
    %43 = arith.maximumf %41, %42 : vector<16x128xf32>
    %44 = arith.truncf %43 : vector<16x128xf32> to vector<16x128xbf16>
    %c0_31 = arith.constant 0 : index
    %c0_32 = arith.constant 0 : index
    %45 = vector.load %arg13[%c0_31, %c0_32] : memref<128x128xbf16, #tpu.memory_space<vmem>>, vector<128x128xbf16>
    %cst_33 = arith.constant dense<0.000000e+00> : vector<16x128xf32>
    %46 = tpu.matmul %44, %45, %cst_33 {dimension_numbers = #tpu.dot_dimension_numbers<[1], [0], [0], [1], [0, 0, 1, 1], [], []>} : vector<16x128xbf16>, vector<128x128xbf16>, vector<16x128xf32> -> vector<16x128xf32>
    %c0_34 = arith.constant 0 : index
    %c0_35 = arith.constant 0 : index
    %47 = vector.load %arg14[%c0_34, %c0_35] : memref<1x128xf32, #tpu.memory_space<vmem>>, vector<1x128xf32>
    %48 = vector.broadcast %47 : vector<1x128xf32> to vector<16x128xf32>
    %49 = arith.addf %46, %48 : vector<16x128xf32>
    %cst_36 = arith.constant 0.000000e+00 : f32
    %50 = vector.broadcast %cst_36 : f32 to vector<16x128xf32>
    %51 = arith.maximumf %49, %50 : vector<16x128xf32>
    %52 = arith.truncf %51 : vector<16x128xf32> to vector<16x128xbf16>
    %c0_37 = arith.constant 0 : index
    %c0_38 = arith.constant 0 : index
    %53 = vector.load %arg15[%c0_37, %c0_38] : memref<128x128xbf16, #tpu.memory_space<vmem>>, vector<128x128xbf16>
    %cst_39 = arith.constant dense<0.000000e+00> : vector<16x128xf32>
    %54 = tpu.matmul %52, %53, %cst_39 {dimension_numbers = #tpu.dot_dimension_numbers<[1], [0], [0], [1], [0, 0, 1, 1], [], []>} : vector<16x128xbf16>, vector<128x128xbf16>, vector<16x128xf32> -> vector<16x128xf32>
    %c0_40 = arith.constant 0 : index
    %c0_41 = arith.constant 0 : index
    %55 = vector.load %arg16[%c0_40, %c0_41] : memref<1x128xf32, #tpu.memory_space<vmem>>, vector<1x128xf32>
    %56 = vector.broadcast %55 : vector<1x128xf32> to vector<16x128xf32>
    %57 = arith.addf %54, %56 : vector<16x128xf32>
    %c0_42 = arith.constant 0 : index
    %c0_43 = arith.constant 0 : index
    %58 = vector.load %arg17[%c0_42, %c0_43] : memref<16x128xf32, #tpu.memory_space<vmem>>, vector<16x128xf32>
    tpu.vector_store %arg17[%c0_42, %c0_43], %57 {strides = array<i32>} : memref<16x128xf32, #tpu.memory_space<vmem>>, vector<16x128xf32>,
    %c0_44 = arith.constant 0 : index
    %c0_45 = arith.constant 0 : index
    %59 = vector.load %arg18[%c0_44, %c0_45] : memref<16x256xf32, #tpu.memory_space<vmem>>, vector<16x256xf32>
    tpu.vector_store %arg18[%c0_44, %c0_45], %27 {strides = array<i32>} : memref<16x256xf32, #tpu.memory_space<vmem>>, vector<16x256xf32>,
    return
  }
  func.func @transform_0(%arg0: i32) -> (i32, i32) {
    %c0_i32 = arith.constant 0 : i32
    %c0_i32_0 = arith.constant 0 : i32
    return %arg0, %c0_i32 : i32, i32
  }
  func.func @transform_1(%arg0: i32) -> (i32, i32) {
    %c0_i32 = arith.constant 0 : i32
    %c0_i32_0 = arith.constant 0 : i32
    return %arg0, %c0_i32 : i32, i32
  }
  func.func @transform_2(%arg0: i32) -> (i32, i32) {
    %c0_i32 = arith.constant 0 : i32
    %c0_i32_0 = arith.constant 0 : i32
    %c0_i32_1 = arith.constant 0 : i32
    return %c0_i32, %c0_i32_0 : i32, i32
  }
  func.func @transform_3(%arg0: i32) -> (i32, i32) {
    %c0_i32 = arith.constant 0 : i32
    %c0_i32_0 = arith.constant 0 : i32
    %c0_i32_1 = arith.constant 0 : i32
    return %c0_i32, %c0_i32_0 : i32, i32
  }
  func.func @transform_4(%arg0: i32) -> (i32, i32) {
    %c0_i32 = arith.constant 0 : i32
    %c0_i32_0 = arith.constant 0 : i32
    %c0_i32_1 = arith.constant 0 : i32
    return %c0_i32, %c0_i32_0 : i32, i32
  }
  func.func @transform_5(%arg0: i32) -> (i32, i32) {
    %c0_i32 = arith.constant 0 : i32
    %c0_i32_0 = arith.constant 0 : i32
    %c0_i32_1 = arith.constant 0 : i32
    return %c0_i32, %c0_i32_0 : i32, i32
  }
  func.func @transform_6(%arg0: i32) -> (i32, i32) {
    %c0_i32 = arith.constant 0 : i32
    %c0_i32_0 = arith.constant 0 : i32
    %c0_i32_1 = arith.constant 0 : i32
    return %c0_i32, %c0_i32_0 : i32, i32
  }
  func.func @transform_7(%arg0: i32) -> (i32, i32) {
    %c0_i32 = arith.constant 0 : i32
    %c0_i32_0 = arith.constant 0 : i32
    %c0_i32_1 = arith.constant 0 : i32
    return %c0_i32, %c0_i32_0 : i32, i32
  }
  func.func @transform_8(%arg0: i32) -> (i32, i32) {
    %c0_i32 = arith.constant 0 : i32
    %c0_i32_0 = arith.constant 0 : i32
    %c0_i32_1 = arith.constant 0 : i32
    return %c0_i32, %c0_i32_0 : i32, i32
  }
  func.func @transform_9(%arg0: i32) -> (i32, i32) {
    %c0_i32 = arith.constant 0 : i32
    %c0_i32_0 = arith.constant 0 : i32
    %c0_i32_1 = arith.constant 0 : i32
    return %c0_i32, %c0_i32_0 : i32, i32
  }
  func.func @transform_10(%arg0: i32) -> (i32, i32) {
    %c0_i32 = arith.constant 0 : i32
    %c0_i32_0 = arith.constant 0 : i32
    %c0_i32_1 = arith.constant 0 : i32
    return %c0_i32, %c0_i32_0 : i32, i32
  }
  func.func @transform_11(%arg0: i32) -> (i32, i32) {
    %c0_i32 = arith.constant 0 : i32
    %c0_i32_0 = arith.constant 0 : i32
    %c0_i32_1 = arith.constant 0 : i32
    return %c0_i32, %c0_i32_0 : i32, i32
  }
  func.func @transform_12(%arg0: i32) -> (i32, i32) {
    %c0_i32 = arith.constant 0 : i32
    %c0_i32_0 = arith.constant 0 : i32
    %c0_i32_1 = arith.constant 0 : i32
    return %c0_i32, %c0_i32_0 : i32, i32
  }
  func.func @transform_13(%arg0: i32) -> (i32, i32) {
    %c0_i32 = arith.constant 0 : i32
    %c0_i32_0 = arith.constant 0 : i32
    %c0_i32_1 = arith.constant 0 : i32
    return %c0_i32, %c0_i32_0 : i32, i32
  }
  func.func @transform_14(%arg0: i32) -> (i32, i32) {
    %c0_i32 = arith.constant 0 : i32
    %c0_i32_0 = arith.constant 0 : i32
    %c0_i32_1 = arith.constant 0 : i32
    return %c0_i32, %c0_i32_0 : i32, i32
  }
  func.func @transform_15(%arg0: i32) -> (i32, i32) {
    %c0_i32 = arith.constant 0 : i32
    %c0_i32_0 = arith.constant 0 : i32
    %c0_i32_1 = arith.constant 0 : i32
    return %c0_i32, %c0_i32_0 : i32, i32
  }
  func.func @transform_16(%arg0: i32) -> (i32, i32) {
    %c0_i32 = arith.constant 0 : i32
    %c0_i32_0 = arith.constant 0 : i32
    return %arg0, %c0_i32 : i32, i32
  }
  func.func @transform_17(%arg0: i32) -> (i32, i32) {
    %c0_i32 = arith.constant 0 : i32
    %c0_i32_0 = arith.constant 0 : i32
    return %arg0, %c0_i32 : i32, i32
  }
}

</mosaic_0001>

<llo_original>
// kernel: _vae_forward_impl.1
$region0: #{_vae_forward_impl.1}
  #allocation0 [shape = 'u32[]', space=smem, size = 0x4, offset = 0x4, fixed_abs, tag = 'smem constant byte address 0x4 - core index']
  #allocation1 [shape = 'u32[144,128]{1,0:T(1,128)}', space=vmem, size = 0x12000, scoped, tag = 'internal scratch']
  %s0 = inlined_call_operand.vmem [shape: bf16[16,128], index: 0, kind: input, shape index: {}]
  %s1 = inlined_call_operand.vmem [shape: f32[16,128], index: 1, kind: input, shape index: {}]
  %s2 = inlined_call_operand.hbm [shape: bf16[128,128], index: 2, kind: input, shape index: {}]
  %s3 = inlined_call_operand.vmem [shape: f32[1,128], index: 3, kind: input, shape index: {}]
  %s4 = inlined_call_operand.vmem [shape: bf16[128,128], index: 4, kind: input, shape index: {}]
  %s5 = inlined_call_operand.vmem [shape: f32[1,128], index: 5, kind: input, shape index: {}]
  %s6 = inlined_call_operand.hbm [shape: bf16[128,128], index: 6, kind: input, shape index: {}]
  %s7 = inlined_call_operand.vmem [shape: f32[1,128], index: 7, kind: input, shape index: {}]
  %s8 = inlined_call_operand.hbm [shape: bf16[128,256], index: 8, kind: input, shape index: {}]
  %s9 = inlined_call_operand.vmem [shape: f32[1,256], index: 9, kind: input, shape index: {}]
  %s10 = inlined_call_operand.hbm [shape: bf16[128,128], index: 10, kind: input, shape index: {}]
  %s11 = inlined_call_operand.vmem [shape: f32[1,128], index: 11, kind: input, shape index: {}]
  %s12 = inlined_call_operand.hbm [shape: bf16[128,128], index: 12, kind: input, shape index: {}]
  %s13 = inlined_call_operand.vmem [shape: f32[1,128], index: 13, kind: input, shape index: {}]
  %s14 = inlined_call_operand.hbm [shape: bf16[128,128], index: 14, kind: input, shape index: {}]
  %s15 = inlined_call_operand.vmem [shape: f32[1,128], index: 15, kind: input, shape index: {}]
  %s16 = inlined_call_operand.vmem [shape: f32[16,128], index: 16, kind: output, shape index: {0}]
  %s17 = inlined_call_operand.vmem [shape: f32[16,256], index: 17, kind: output, shape index: {1}]
  %18 = xla_tuple %s16, %s17
  %s19 = sld [smem:[#allocation0]]
  $region106: #{_vae_forward_impl.1} parent=0
    _
  %s21 = ssub.s32 1, %s19
  %s22 = scalar_select 0, %s21, %s19
  $region1: #{_vae_forward_impl.1} parent=0
    #allocation2 [shape = 'u8[32768]{0}', space=vmem, size = 0x8000, scoped, tag = 'input window, operand 2, single buffered']
    #allocation3 [shape = 's32[1]{0}', space=sflag, size = 0x4, scoped, tag = 'scoped memory for _vae_forward_impl.1']
    #allocation4 [shape = 'u8[32768]{0}', space=vmem, size = 0x8000, scoped, tag = 'input window, operand 6, single buffered']
    #allocation5 [shape = 's32[1]{0}', space=sflag, size = 0x4, scoped, tag = 'scoped memory for _vae_forward_impl.1']
    #allocation6 [shape = 'u8[65536]{0}', space=vmem, size = 0x10000, scoped, tag = 'input window, operand 8, single buffered']
    #allocation7 [shape = 'u8[32768]{0}', space=vmem, size = 0x8000, scoped, tag = 'input window, operand 10, single buffered']
    #allocation8 [shape = 's32[1]{0}', space=sflag, size = 0x4, scoped, tag = 'scoped memory for _vae_forward_impl.1']
    #allocation9 [shape = 'u8[32768]{0}', space=vmem, size = 0x8000, scoped, tag = 'input window, operand 12, single buffered']
    #allocation10 [shape = 'u8[32768]{0}', space=vmem, size = 0x8000, scoped, tag = 'input window, operand 14, single buffered']
    #allocation11 [shape = 's32[1]{0}', space=sflag, size = 0x4, scoped, tag = 'scoped memory for _vae_forward_impl.1']
    %23 = vsyncpa [#allocation3], 0
    %24 = vsyncpa [#allocation5], 0
    %25 = vsyncpa [#allocation8], 0
    %26 = vsyncpa [#allocation11], 0
    // Predicated region
    $region2: #{_vae_forward_impl.1} parent=1 // pred_check
      _
    $region3: #{_vae_forward_impl.1} parent=1 // pred_check_branch
      %28 = sbr.rel (0) target = $region5
    $region4: #{_vae_forward_impl.1} parent=1 // pred_region
      _
    $region5: #{_vae_forward_impl.1} parent=1 // pred_fallthru
      _
    // Predicated region
    $region6: #{_vae_forward_impl.1} parent=1 // pred_check
      _
    $region7: #{_vae_forward_impl.1} parent=1 // pred_check_branch
      %30 = sbr.rel (0) target = $region9
    $region8: #{_vae_forward_impl.1} parent=1 // pred_region
      _
    $region9: #{_vae_forward_impl.1} parent=1 // pred_fallthru
      _
    // Predicated region
    $region10: #{_vae_forward_impl.1} parent=1 // pred_check
      _
    $region11: #{_vae_forward_impl.1} parent=1 // pred_check_branch
      %32 = sbr.rel (0) target = $region13
    $region12: #{_vae_forward_impl.1} parent=1 // pred_region
      %s34 = ssub.s32 1024, 1024
      %35 = vsyncadd [#allocation3], %s34
      %s36 = sshll.u32 [#allocation2], 4
      %s37 = int_to_ptr.vmem [resolvable:$true] %s36
      %42 = dma.hbm_to_vmem [thread:$0]  %s2, 1024, %s37, [#allocation3], 64, 64, 4
    $region13: #{_vae_forward_impl.1} parent=1 // pred_fallthru
      _
    // Predicated region
    $region14: #{_vae_forward_impl.1} parent=1 // pred_check
      _
    $region15: #{_vae_forward_impl.1} parent=1 // pred_check_branch
      %44 = sbr.rel (0) target = $region17
    $region16: #{_vae_forward_impl.1} parent=1 // pred_region
      _
    $region17: #{_vae_forward_impl.1} parent=1 // pred_fallthru
      _
    // Predicated region
    $region18: #{_vae_forward_impl.1} parent=1 // pred_check
      _
    $region19: #{_vae_forward_impl.1} parent=1 // pred_check_branch
      %46 = sbr.rel (0) target = $region21
    $region20: #{_vae_forward_impl.1} parent=1 // pred_region
      _
    $region21: #{_vae_forward_impl.1} parent=1 // pred_fallthru
      _
    // Predicated region
    $region22: #{_vae_forward_impl.1} parent=1 // pred_check
      _
    $region23: #{_vae_forward_impl.1} parent=1 // pred_check_branch
      %48 = sbr.rel (0) target = $region25
    $region24: #{_vae_forward_impl.1} parent=1 // pred_region
      _
    $region25: #{_vae_forward_impl.1} parent=1 // pred_fallthru
      _
    // Predicated region
    $region26: #{_vae_forward_impl.1} parent=1 // pred_check
      _
    $region27: #{_vae_forward_impl.1} parent=1 // pred_check_branch
      %50 = sbr.rel (0) target = $region29
    $region28: #{_vae_forward_impl.1} parent=1 // pred_region
      %s52 = ssub.s32 1024, 1024
      %53 = vsyncadd [#allocation5], %s52
      %s54 = sshll.u32 [#allocation4], 4
      %s55 = int_to_ptr.vmem [resolvable:$true] %s54
      %60 = dma.hbm_to_vmem [thread:$0]  %s6, 1024, %s55, [#allocation5], 64, 64, 4
    $region29: #{_vae_forward_impl.1} parent=1 // pred_fallthru
      _
    // Predicated region
    $region30: #{_vae_forward_impl.1} parent=1 // pred_check
      _
    $region31: #{_vae_forward_impl.1} parent=1 // pred_check_branch
      %62 = sbr.rel (0) target = $region33
    $region32: #{_vae_forward_impl.1} parent=1 // pred_region
      _
    $region33: #{_vae_forward_impl.1} parent=1 // pred_fallthru
      _
    // Predicated region
    $region34: #{_vae_forward_impl.1} parent=1 // pred_check
      _
    $region35: #{_vae_forward_impl.1} parent=1 // pred_check_branch
      %64 = sbr.rel (0) target = $region37
    $region36: #{_vae_forward_impl.1} parent=1 // pred_region
      %s66 = ssub.s32 2048, 2048
      %67 = vsyncadd [#allocation5], %s66
      %s68 = sshll.u32 [#allocation6], 4
      %s69 = int_to_ptr.vmem [resolvable:$true] %s68
      %74 = dma.hbm_to_vmem [thread:$0]  %s8, 2048, %s69, [#allocation5], 128, 128, 8
    $region37: #{_vae_forward_impl.1} parent=1 // pred_fallthru
      _
    // Predicated region
    $region38: #{_vae_forward_impl.1} parent=1 // pred_check
      _
    $region39: #{_vae_forward_impl.1} parent=1 // pred_check_branch
      %76 = sbr.rel (0) target = $region41
    $region40: #{_vae_forward_impl.1} parent=1 // pred_region
      _
    $region41: #{_vae_forward_impl.1} parent=1 // pred_fallthru
      _
    // Predicated region
    $region42: #{_vae_forward_impl.1} parent=1 // pred_check
      _
    $region43: #{_vae_forward_impl.1} parent=1 // pred_check_branch
      %78 = sbr.rel (0) target = $region45
    $region44: #{_vae_forward_impl.1} parent=1 // pred_region
      %s80 = ssub.s32 1024, 1024
      %81 = vsyncadd [#allocation8], %s80
      %s82 = sshll.u32 [#allocation7], 4
      %s83 = int_to_ptr.vmem [resolvable:$true] %s82
      %88 = dma.hbm_to_vmem [thread:$0]  %s10, 1024, %s83, [#allocation8], 64, 64, 4
    $region45: #{_vae_forward_impl.1} parent=1 // pred_fallthru
      _
    // Predicated region
    $region46: #{_vae_forward_impl.1} parent=1 // pred_check
      _
    $region47: #{_vae_forward_impl.1} parent=1 // pred_check_branch
      %90 = sbr.rel (0) target = $region49
    $region48: #{_vae_forward_impl.1} parent=1 // pred_region
      _
    $region49: #{_vae_forward_impl.1} parent=1 // pred_fallthru
      _
    // Predicated region
    $region50: #{_vae_forward_impl.1} parent=1 // pred_check
      _
    $region51: #{_vae_forward_impl.1} parent=1 // pred_check_branch
      %92 = sbr.rel (0) target = $region53
    $region52: #{_vae_forward_impl.1} parent=1 // pred_region
      %s94 = ssub.s32 1024, 1024
      %95 = vsyncadd [#allocation8], %s94
      %s96 = sshll.u32 [#allocation9], 4
      %s97 = int_to_ptr.vmem [resolvable:$true] %s96
      %102 = dma.hbm_to_vmem [thread:$0]  %s12, 1024, %s97, [#allocation8], 64, 64, 4
    $region53: #{_vae_forward_impl.1} parent=1 // pred_fallthru
      _
    // Predicated region
    $region54: #{_vae_forward_impl.1} parent=1 // pred_check
      _
    $region55: #{_vae_forward_impl.1} parent=1 // pred_check_branch
      %104 = sbr.rel (0) target = $region57
    $region56: #{_vae_forward_impl.1} parent=1 // pred_region
      _
    $region57: #{_vae_forward_impl.1} parent=1 // pred_fallthru
      _
    // Predicated region
    $region58: #{_vae_forward_impl.1} parent=1 // pred_check
      _
    $region59: #{_vae_forward_impl.1} parent=1 // pred_check_branch
      %106 = sbr.rel (0) target = $region61
    $region60: #{_vae_forward_impl.1} parent=1 // pred_region
      %s108 = ssub.s32 1024, 1024
      %109 = vsyncadd [#allocation11], %s108
      %s110 = sshll.u32 [#allocation10], 4
      %s111 = int_to_ptr.vmem [resolvable:$true] %s110
      %116 = dma.hbm_to_vmem [thread:$0]  %s14, 1024, %s111, [#allocation11], 64, 64, 4
    $region61: #{_vae_forward_impl.1} parent=1 // pred_fallthru
      _
    // Predicated region
    $region62: #{_vae_forward_impl.1} parent=1 // pred_check
      _
    $region63: #{_vae_forward_impl.1} parent=1 // pred_check_branch
      %118 = sbr.rel (0) target = $region65
    $region64: #{_vae_forward_impl.1} parent=1 // pred_region
      _
    $region65: #{_vae_forward_impl.1} parent=1 // pred_fallthru
      _
    // Predicated region
    $region66: #{_vae_forward_impl.1} parent=1 // pred_check
      _
    $region67: #{_vae_forward_impl.1} parent=1 // pred_check_branch
      %120 = sbr.rel (0) target = $region69
    $region68: #{_vae_forward_impl.1} parent=1 // pred_region
      %121 = dma.done [#allocation3], 1024
    $region69: #{_vae_forward_impl.1} parent=1 // pred_fallthru
      _
    // Predicated region
    $region70: #{_vae_forward_impl.1} parent=1 // pred_check
      _
    $region71: #{_vae_forward_impl.1} parent=1 // pred_check_branch
      %123 = sbr.rel (0) target = $region73
    $region72: #{_vae_forward_impl.1} parent=1 // pred_region
      %124 = dma.done [#allocation5], 1024
    $region73: #{_vae_forward_impl.1} parent=1 // pred_fallthru
      _
    // Predicated region
    $region74: #{_vae_forward_impl.1} parent=1 // pred_check
      _
    $region75: #{_vae_forward_impl.1} parent=1 // pred_check_branch
      %126 = sbr.rel (0) target = $region77
    $region76: #{_vae_forward_impl.1} parent=1 // pred_region
      %127 = dma.done [#allocation5], 2048
    $region77: #{_vae_forward_impl.1} parent=1 // pred_fallthru
      _
    // Predicated region
    $region78: #{_vae_forward_impl.1} parent=1 // pred_check
      _
    $region79: #{_vae_forward_impl.1} parent=1 // pred_check_branch
      %129 = sbr.rel (0) target = $region81
    $region80: #{_vae_forward_impl.1} parent=1 // pred_region
      %130 = dma.done [#allocation8], 1024
    $region81: #{_vae_forward_impl.1} parent=1 // pred_fallthru
      _
    // Predicated region
    $region82: #{_vae_forward_impl.1} parent=1 // pred_check
      _
    $region83: #{_vae_forward_impl.1} parent=1 // pred_check_branch
      %132 = sbr.rel (0) target = $region85
    $region84: #{_vae_forward_impl.1} parent=1 // pred_region
      %133 = dma.done [#allocation8], 1024
    $region85: #{_vae_forward_impl.1} parent=1 // pred_fallthru
      _
    // Predicated region
    $region86: #{_vae_forward_impl.1} parent=1 // pred_check
      _
    $region87: #{_vae_forward_impl.1} parent=1 // pred_check_branch
      %135 = sbr.rel (0) target = $region89
    $region88: #{_vae_forward_impl.1} parent=1 // pred_region
      %136 = dma.done [#allocation11], 1024
    $region89: #{_vae_forward_impl.1} parent=1 // pred_fallthru
      _
    %v138 = vld [vmem:[%s0] sm:$0xf]
    %v139 = vld [vmem:[%s0 + $0x4] sm:$0xf]
    %v140 = vld [vmem:[#allocation2] sm:$0xf]
    %v141 = vld [vmem:[#allocation2 + $0x4] sm:$0xf]
    %v142 = vld [vmem:[#allocation2 + $0x8] sm:$0xf]
    %v143 = vld [vmem:[#allocation2 + $0xc] sm:$0xf]
    %v144 = vld [vmem:[#allocation2 + $0x10] sm:$0xf]
    %v145 = vld [vmem:[#allocation2 + $0x14] sm:$0xf]
    %v146 = vld [vmem:[#allocation2 + $0x18] sm:$0xf]
    %v147 = vld [vmem:[#allocation2 + $0x1c] sm:$0xf]
    %v148 = vld [vmem:[#allocation2 + $0x20] sm:$0xf]
    %v149 = vld [vmem:[#allocation2 + $0x24] sm:$0xf]
    %v150 = vld [vmem:[#allocation2 + $0x28] sm:$0xf]
    %v151 = vld [vmem:[#allocation2 + $0x2c] sm:$0xf]
    %v152 = vld [vmem:[#allocation2 + $0x30] sm:$0xf]
    %v153 = vld [vmem:[#allocation2 + $0x34] sm:$0xf]
    %v154 = vld [vmem:[#allocation2 + $0x38] sm:$0xf]
    %v155 = vld [vmem:[#allocation2 + $0x3c] sm:$0xf]
    %v156 = vld [vmem:[%s3] sm:$0x1]
    %v158 = vlaneseq
    %v159 = vshrl.u32 %v158, 7
    %v160 = vsub.s32 0, %v159
    %v161 = vrot.slane %v156, %v160
    %v165 = vunpack.c.l.b16 %v138
    %v166 = vunpack.c.l.b16 %v139
    %v167 = vpack.c.b16 %v166, %v165
    %v185 = vunpack.c.l.b16 %v140
    %v186 = vunpack.c.l.b16 %v141
    %v187 = vunpack.c.l.b16 %v142
    %v188 = vunpack.c.l.b16 %v143
    %v189 = vunpack.c.l.b16 %v144
    %v190 = vunpack.c.l.b16 %v145
    %v191 = vunpack.c.l.b16 %v146
    %v192 = vunpack.c.l.b16 %v147
    %v193 = vunpack.c.l.b16 %v148
    %v194 = vunpack.c.l.b16 %v149
    %v195 = vunpack.c.l.b16 %v150
    %v196 = vunpack.c.l.b16 %v151
    %v197 = vunpack.c.l.b16 %v152
    %v198 = vunpack.c.l.b16 %v153
    %v199 = vunpack.c.l.b16 %v154
    %v200 = vunpack.c.l.b16 %v155
    %v201 = vpack.c.b16 %v186, %v185
    %v202 = vpack.c.b16 %v188, %v187
    %v203 = vpack.c.b16 %v190, %v189
    %v204 = vpack.c.b16 %v192, %v191
    %v205 = vpack.c.b16 %v194, %v193
    %v206 = vpack.c.b16 %v196, %v195
    %v207 = vpack.c.b16 %v198, %v197
    %v208 = vpack.c.b16 %v200, %v199
    %217 = vmatprep.subr.bf16.mxu0 0
    %218 = vmatpush1.bf16.msra.mxu0 %v201
    %219 = vmatprep.subr.bf16.mxu0 0
    %220 = vmatpush1.bf16.msra.mxu0 %v202
    %221 = vmatprep.subr.bf16.mxu0 0
    %222 = vmatpush1.bf16.msra.mxu0 %v203
    %223 = vmatprep.subr.bf16.mxu0 0
    %224 = vmatpush1.bf16.msra.mxu0 %v204
    %225 = vmatprep.subr.bf16.mxu0 0
    %226 = vmatpush1.bf16.msra.mxu0 %v205
    %227 = vmatprep.subr.bf16.mxu0 0
    %228 = vmatpush1.bf16.msra.mxu0 %v206
    %229 = vmatprep.subr.bf16.mxu0 0
    %230 = vmatpush1.bf16.msra.mxu0 %v207
    %231 = vmatprep.subr.bf16.mxu0 0
    %232 = vmatpush1.bf16.msra.mxu0 %v208
    %233 = vmatprep.subr.bf16.mxu0 0
    %234 = vmatpush1.bf16.msra.mxu0 0
    %235 = vmatprep.subr.bf16.mxu0 0
    %236 = vmatpush1.bf16.msra.mxu0 0
    %237 = vmatprep.subr.bf16.mxu0 0
    %238 = vmatpush1.bf16.msra.mxu0 0
    %239 = vmatprep.subr.bf16.mxu0 0
    %240 = vmatpush1.bf16.msra.mxu0 0
    %241 = vmatprep.subr.bf16.mxu0 0
    %242 = vmatpush1.bf16.msra.mxu0 0
    %243 = vmatprep.subr.bf16.mxu0 0
    %244 = vmatpush1.bf16.msra.mxu0 0
    %245 = vmatprep.subr.bf16.mxu0 0
    %246 = vmatpush1.bf16.msra.mxu0 0
    %247 = vmatprep.subr.bf16.mxu0 0
    %248 = vmatpush1.bf16.msra.mxu0 0
    %249 = vmatprep.mubr.bf16.mxu0 0
    %250 = vmatmul.mubr.bf16.gmra.mrb[0].mxu0 %v167
    %v251 = vpop.f32.mrb[0].mxu0
    %v252 = vadd.f32 %v161, %v251
    %v253 = vpop.f32.mrb[0].mxu0
    %v254 = vpop.f32.mrb[0].mxu0
    %v255 = vadd.f32 %v161, %v254
    %v256 = vpop.f32.mrb[0].mxu0
    %257 = vdwg.mxu0
    %v258 = vmax.f32 %v252, 0.0
    %v259 = vmax.f32 %v255, 0.0
    %v260 = vpack.c.bf16 %v259, %v258
    %v261 = vld [vmem:[%s4] sm:$0xf]
    %v262 = vld [vmem:[%s4 + $0x4] sm:$0xf]
    %v263 = vld [vmem:[%s4 + $0x8] sm:$0xf]
    %v264 = vld [vmem:[%s4 + $0xc] sm:$0xf]
    %v265 = vld [vmem:[%s4 + $0x10] sm:$0xf]
    %v266 = vld [vmem:[%s4 + $0x14] sm:$0xf]
    %v267 = vld [vmem:[%s4 + $0x18] sm:$0xf]
    %v268 = vld [vmem:[%s4 + $0x1c] sm:$0xf]
    %v269 = vld [vmem:[%s4 + $0x20] sm:$0xf]
    %v270 = vld [vmem:[%s4 + $0x24] sm:$0xf]
    %v271 = vld [vmem:[%s4 + $0x28] sm:$0xf]
    %v272 = vld [vmem:[%s4 + $0x2c] sm:$0xf]
    %v273 = vld [vmem:[%s4 + $0x30] sm:$0xf]
    %v274 = vld [vmem:[%s4 + $0x34] sm:$0xf]
    %v275 = vld [vmem:[%s4 + $0x38] sm:$0xf]
    %v276 = vld [vmem:[%s4 + $0x3c] sm:$0xf]
    %v277 = vld [vmem:[%s5] sm:$0x1]
    %v279 = vlaneseq
    %v280 = vshrl.u32 %v279, 7
    %v281 = vsub.s32 0, %v280
    %v282 = vrot.slane %v277, %v281
    %v300 = vunpack.c.l.b16 %v261
    %v301 = vunpack.c.l.b16 %v262
    %v302 = vunpack.c.l.b16 %v263
    %v303 = vunpack.c.l.b16 %v264
    %v304 = vunpack.c.l.b16 %v265
    %v305 = vunpack.c.l.b16 %v266
    %v306 = vunpack.c.l.b16 %v267
    %v307 = vunpack.c.l.b16 %v268
    %v308 = vunpack.c.l.b16 %v269
    %v309 = vunpack.c.l.b16 %v270
    %v310 = vunpack.c.l.b16 %v271
    %v311 = vunpack.c.l.b16 %v272
    %v312 = vunpack.c.l.b16 %v273
    %v313 = vunpack.c.l.b16 %v274
    %v314 = vunpack.c.l.b16 %v275
    %v315 = vunpack.c.l.b16 %v276
    %v316 = vpack.c.b16 %v301, %v300
    %v317 = vpack.c.b16 %v303, %v302
    %v318 = vpack.c.b16 %v305, %v304
    %v319 = vpack.c.b16 %v307, %v306
    %v320 = vpack.c.b16 %v309, %v308
    %v321 = vpack.c.b16 %v311, %v310
    %v322 = vpack.c.b16 %v313, %v312
    %v323 = vpack.c.b16 %v315, %v314
    %332 = vmatprep.subr.bf16.mxu0 0
    %333 = vmatpush1.bf16.msra.mxu0 %v316
    %334 = vmatprep.subr.bf16.mxu0 0
    %335 = vmatpush1.bf16.msra.mxu0 %v317
    %336 = vmatprep.subr.bf16.mxu0 0
    %337 = vmatpush1.bf16.msra.mxu0 %v318
    %338 = vmatprep.subr.bf16.mxu0 0
    %339 = vmatpush1.bf16.msra.mxu0 %v319
    %340 = vmatprep.subr.bf16.mxu0 0
    %341 = vmatpush1.bf16.msra.mxu0 %v320
    %342 = vmatprep.subr.bf16.mxu0 0
    %343 = vmatpush1.bf16.msra.mxu0 %v321
    %344 = vmatprep.subr.bf16.mxu0 0
    %345 = vmatpush1.bf16.msra.mxu0 %v322
    %346 = vmatprep.subr.bf16.mxu0 0
    %347 = vmatpush1.bf16.msra.mxu0 %v323
    %348 = vmatprep.subr.bf16.mxu0 0
    %349 = vmatpush1.bf16.msra.mxu0 0
    %350 = vmatprep.subr.bf16.mxu0 0
    %351 = vmatpush1.bf16.msra.mxu0 0
    %352 = vmatprep.subr.bf16.mxu0 0
    %353 = vmatpush1.bf16.msra.mxu0 0
    %354 = vmatprep.subr.bf16.mxu0 0
    %355 = vmatpush1.bf16.msra.mxu0 0
    %356 = vmatprep.subr.bf16.mxu0 0
    %357 = vmatpush1.bf16.msra.mxu0 0
    %358 = vmatprep.subr.bf16.mxu0 0
    %359 = vmatpush1.bf16.msra.mxu0 0
    %360 = vmatprep.subr.bf16.mxu0 0
    %361 = vmatpush1.bf16.msra.mxu0 0
    %362 = vmatprep.subr.bf16.mxu0 0
    %363 = vmatpush1.bf16.msra.mxu0 0
    %364 = vmatprep.mubr.bf16.mxu0 0
    %365 = vmatmul.mubr.bf16.gmra.mrb[0].mxu0 %v260
    %v366 = vpop.f32.mrb[0].mxu0
    %v367 = vadd.f32 %v282, %v366
    %v368 = vpop.f32.mrb[0].mxu0
    %v369 = vpop.f32.mrb[0].mxu0
    %v370 = vadd.f32 %v282, %v369
    %v371 = vpop.f32.mrb[0].mxu0
    %372 = vdwg.mxu0
    %v373 = vmax.f32 %v367, 0.0
    %v374 = vmax.f32 %v370, 0.0
    %v375 = vpack.c.bf16 %v374, %v373
    %v376 = vld [vmem:[#allocation4] sm:$0xf]
    %v377 = vld [vmem:[#allocation4 + $0x4] sm:$0xf]
    %v378 = vld [vmem:[#allocation4 + $0x8] sm:$0xf]
    %v379 = vld [vmem:[#allocation4 + $0xc] sm:$0xf]
    %v380 = vld [vmem:[#allocation4 + $0x10] sm:$0xf]
    %v381 = vld [vmem:[#allocation4 + $0x14] sm:$0xf]
    %v382 = vld [vmem:[#allocation4 + $0x18] sm:$0xf]
    %v383 = vld [vmem:[#allocation4 + $0x1c] sm:$0xf]
    %v384 = vld [vmem:[#allocation4 + $0x20] sm:$0xf]
    %v385 = vld [vmem:[#allocation4 + $0x24] sm:$0xf]
    %v386 = vld [vmem:[#allocation4 + $0x28] sm:$0xf]
    %v387 = vld [vmem:[#allocation4 + $0x2c] sm:$0xf]
    %v388 = vld [vmem:[#allocation4 + $0x30] sm:$0xf]
    %v389 = vld [vmem:[#allocation4 + $0x34] sm:$0xf]
    %v390 = vld [vmem:[#allocation4 + $0x38] sm:$0xf]
    %v391 = vld [vmem:[#allocation4 + $0x3c] sm:$0xf]
    %v392 = vld [vmem:[%s7] sm:$0x1]
    %v394 = vlaneseq
    %v395 = vshrl.u32 %v394, 7
    %v396 = vsub.s32 0, %v395
    %v397 = vrot.slane %v392, %v396
    %v415 = vunpack.c.l.b16 %v376
    %v416 = vunpack.c.l.b16 %v377
    %v417 = vunpack.c.l.b16 %v378
    %v418 = vunpack.c.l.b16 %v379
    %v419 = vunpack.c.l.b16 %v380
    %v420 = vunpack.c.l.b16 %v381
    %v421 = vunpack.c.l.b16 %v382
    %v422 = vunpack.c.l.b16 %v383
    %v423 = vunpack.c.l.b16 %v384
    %v424 = vunpack.c.l.b16 %v385
    %v425 = vunpack.c.l.b16 %v386
    %v426 = vunpack.c.l.b16 %v387
    %v427 = vunpack.c.l.b16 %v388
    %v428 = vunpack.c.l.b16 %v389
    %v429 = vunpack.c.l.b16 %v390
    %v430 = vunpack.c.l.b16 %v391
    %v431 = vpack.c.b16 %v416, %v415
    %v432 = vpack.c.b16 %v418, %v417
    %v433 = vpack.c.b16 %v420, %v419
    %v434 = vpack.c.b16 %v422, %v421
    %v435 = vpack.c.b16 %v424, %v423
    %v436 = vpack.c.b16 %v426, %v425
    %v437 = vpack.c.b16 %v428, %v427
    %v438 = vpack.c.b16 %v430, %v429
    %447 = vmatprep.subr.bf16.mxu0 0
    %448 = vmatpush1.bf16.msra.mxu0 %v431
    %449 = vmatprep.subr.bf16.mxu0 0
    %450 = vmatpush1.bf16.msra.mxu0 %v432
    %451 = vmatprep.subr.bf16.mxu0 0
    %452 = vmatpush1.bf16.msra.mxu0 %v433
    %453 = vmatprep.subr.bf16.mxu0 0
    %454 = vmatpush1.bf16.msra.mxu0 %v434
    %455 = vmatprep.subr.bf16.mxu0 0
    %456 = vmatpush1.bf16.msra.mxu0 %v435
    %457 = vmatprep.subr.bf16.mxu0 0
    %458 = vmatpush1.bf16.msra.mxu0 %v436
    %459 = vmatprep.subr.bf16.mxu0 0
    %460 = vmatpush1.bf16.msra.mxu0 %v437
    %461 = vmatprep.subr.bf16.mxu0 0
    %462 = vmatpush1.bf16.msra.mxu0 %v438
    %463 = vmatprep.subr.bf16.mxu0 0
    %464 = vmatpush1.bf16.msra.mxu0 0
    %465 = vmatprep.subr.bf16.mxu0 0
    %466 = vmatpush1.bf16.msra.mxu0 0
    %467 = vmatprep.subr.bf16.mxu0 0
    %468 = vmatpush1.bf16.msra.mxu0 0
    %469 = vmatprep.subr.bf16.mxu0 0
    %470 = vmatpush1.bf16.msra.mxu0 0
    %471 = vmatprep.subr.bf16.mxu0 0
    %472 = vmatpush1.bf16.msra.mxu0 0
    %473 = vmatprep.subr.bf16.mxu0 0
    %474 = vmatpush1.bf16.msra.mxu0 0
    %475 = vmatprep.subr.bf16.mxu0 0
    %476 = vmatpush1.bf16.msra.mxu0 0
    %477 = vmatprep.subr.bf16.mxu0 0
    %478 = vmatpush1.bf16.msra.mxu0 0
    %479 = vmatprep.mubr.bf16.mxu0 0
    %480 = vmatmul.mubr.bf16.gmra.mrb[0].mxu0 %v375
    %v481 = vpop.f32.mrb[0].mxu0
    %v482 = vadd.f32 %v397, %v481
    %v483 = vpop.f32.mrb[0].mxu0
    %v484 = vpop.f32.mrb[0].mxu0
    %v485 = vadd.f32 %v397, %v484
    %v486 = vpop.f32.mrb[0].mxu0
    %487 = vdwg.mxu0
    %v488 = vpack.c.bf16 %v485, %v482
    %v489 = vld [vmem:[#allocation6] sm:$0xff]
    %v490 = vld [vmem:[#allocation6 + $0x8] sm:$0xff]
    %v491 = vld [vmem:[#allocation6 + $0x10] sm:$0xff]
    %v492 = vld [vmem:[#allocation6 + $0x18] sm:$0xff]
    %v493 = vld [vmem:[#allocation6 + $0x20] sm:$0xff]
    %v494 = vld [vmem:[#allocation6 + $0x28] sm:$0xff]
    %v495 = vld [vmem:[#allocation6 + $0x30] sm:$0xff]
    %v496 = vld [vmem:[#allocation6 + $0x38] sm:$0xff]
    %v497 = vld [vmem:[#allocation6 + $0x40] sm:$0xff]
    %v498 = vld [vmem:[#allocation6 + $0x48] sm:$0xff]
    %v499 = vld [vmem:[#allocation6 + $0x50] sm:$0xff]
    %v500 = vld [vmem:[#allocation6 + $0x58] sm:$0xff]
    %v501 = vld [vmem:[#allocation6 + $0x60] sm:$0xff]
    %v502 = vld [vmem:[#allocation6 + $0x68] sm:$0xff]
    %v503 = vld [vmem:[#allocation6 + $0x70] sm:$0xff]
    %v504 = vld [vmem:[#allocation6 + $0x78] sm:$0xff]
    %v505 = vld [vmem:[%s9] sm:$0x3]
    %v507 = vlaneseq
    %v508 = vshrl.u32 %v507, 7
    %v509 = vsub.s32 0, %v508
    %v510 = vrot.slane %v505, %v509
    %v511 = vlaneseq
    %v512 = vshrl.u32 %v511, 7
    %v513 = vsub.s32 1, %v512
    %v514 = vrot.slane %v505, %v513
    %v533 = vunpack.c.l.b16 %v489
    %v534 = vunpack.c.h.b16 %v489
    %v535 = vunpack.c.l.b16 %v490
    %v536 = vunpack.c.h.b16 %v490
    %v537 = vunpack.c.l.b16 %v491
    %v538 = vunpack.c.h.b16 %v491
    %v539 = vunpack.c.l.b16 %v492
    %v540 = vunpack.c.h.b16 %v492
    %v541 = vunpack.c.l.b16 %v493
    %v542 = vunpack.c.h.b16 %v493
    %v543 = vunpack.c.l.b16 %v494
    %v544 = vunpack.c.h.b16 %v494
    %v545 = vunpack.c.l.b16 %v495
    %v546 = vunpack.c.h.b16 %v495
    %v547 = vunpack.c.l.b16 %v496
    %v548 = vunpack.c.h.b16 %v496
    %v549 = vunpack.c.l.b16 %v497
    %v550 = vunpack.c.h.b16 %v497
    %v551 = vunpack.c.l.b16 %v498
    %v552 = vunpack.c.h.b16 %v498
    %v553 = vunpack.c.l.b16 %v499
    %v554 = vunpack.c.h.b16 %v499
    %v555 = vunpack.c.l.b16 %v500
    %v556 = vunpack.c.h.b16 %v500
    %v557 = vunpack.c.l.b16 %v501
    %v558 = vunpack.c.h.b16 %v501
    %v559 = vunpack.c.l.b16 %v502
    %v560 = vunpack.c.h.b16 %v502
    %v561 = vunpack.c.l.b16 %v503
    %v562 = vunpack.c.h.b16 %v503
    %v563 = vunpack.c.l.b16 %v504
    %v564 = vunpack.c.h.b16 %v504
    %v565 = vpack.c.b16 %v535, %v533
    %v566 = vpack.c.b16 %v536, %v534
    %v567 = vpack.c.b16 %v539, %v537
    %v568 = vpack.c.b16 %v540, %v538
    %v569 = vpack.c.b16 %v543, %v541
    %v570 = vpack.c.b16 %v544, %v542
    %v571 = vpack.c.b16 %v547, %v545
    %v572 = vpack.c.b16 %v548, %v546
    %v573 = vpack.c.b16 %v551, %v549
    %v574 = vpack.c.b16 %v552, %v550
    %v575 = vpack.c.b16 %v555, %v553
    %v576 = vpack.c.b16 %v556, %v554
    %v577 = vpack.c.b16 %v559, %v557
    %v578 = vpack.c.b16 %v560, %v558
    %v579 = vpack.c.b16 %v563, %v561
    %v580 = vpack.c.b16 %v564, %v562
    %597 = vmatprep.subr.bf16.mxu0 %v566
    %598 = vmatpush1.bf16.msra.mxu0 %v565
    %599 = vmatprep.subr.bf16.mxu0 %v568
    %600 = vmatpush1.bf16.msra.mxu0 %v567
    %601 = vmatprep.subr.bf16.mxu0 %v570
    %602 = vmatpush1.bf16.msra.mxu0 %v569
    %603 = vmatprep.subr.bf16.mxu0 %v572
    %604 = vmatpush1.bf16.msra.mxu0 %v571
    %605 = vmatprep.subr.bf16.mxu0 %v574
    %606 = vmatpush1.bf16.msra.mxu0 %v573
    %607 = vmatprep.subr.bf16.mxu0 %v576
    %608 = vmatpush1.bf16.msra.mxu0 %v575
    %609 = vmatprep.subr.bf16.mxu0 %v578
    %610 = vmatpush1.bf16.msra.mxu0 %v577
    %611 = vmatprep.subr.bf16.mxu0 %v580
    %612 = vmatpush1.bf16.msra.mxu0 %v579
    %613 = vmatprep.subr.bf16.mxu0 0
    %614 = vmatpush1.bf16.msra.mxu0 0
    %615 = vmatprep.subr.bf16.mxu0 0
    %616 = vmatpush1.bf16.msra.mxu0 0
    %617 = vmatprep.subr.bf16.mxu0 0
    %618 = vmatpush1.bf16.msra.mxu0 0
    %619 = vmatprep.subr.bf16.mxu0 0
    %620 = vmatpush1.bf16.msra.mxu0 0
    %621 = vmatprep.subr.bf16.mxu0 0
    %622 = vmatpush1.bf16.msra.mxu0 0
    %623 = vmatprep.subr.bf16.mxu0 0
    %624 = vmatpush1.bf16.msra.mxu0 0
    %625 = vmatprep.subr.bf16.mxu0 0
    %626 = vmatpush1.bf16.msra.mxu0 0
    %627 = vmatprep.subr.bf16.mxu0 0
    %628 = vmatpush1.bf16.msra.mxu0 0
    %629 = vmatprep.mubr.bf16.mxu0 0
    %630 = vmatmul.mubr.bf16.gmra.mrb[0].mxu0 %v488
    %v631 = vpop.f32.mrb[0].mxu0
    %v632 = vadd.f32 %v510, %v631
    %v633 = vpop.f32.mrb[0].mxu0
    %v634 = vadd.f32 %v514, %v633
    %v635 = vpop.f32.mrb[0].mxu0
    %v636 = vadd.f32 %v510, %v635
    %v637 = vpop.f32.mrb[0].mxu0
    %v638 = vadd.f32 %v514, %v637
    %639 = vdwg.mxu0
    %v640 = vld [vmem:[%s1] sm:$0xff]
    %v641 = vld [vmem:[%s1 + $0x8] sm:$0xff]
    %v642 = vmul.f32 %v634, 0.5
    %v643 = vmul.f32 %v638, 0.5
    %v644 = vmul.f32 %v642, 1.442695
    %v645 = vpow.pop %v644
    %v646 = vmul.f32 %v643, 1.442695
    %v647 = vpow.pop %v646
    %v648 = vmul.f32 %v640, %v645
    %v649 = vmul.f32 %v641, %v647
    %v650 = vadd.f32 %v632, %v648
    %v651 = vadd.f32 %v636, %v649
    %v652 = vpack.c.bf16 %v651, %v650
    %v653 = vld [vmem:[#allocation7] sm:$0xf]
    %v654 = vld [vmem:[#allocation7 + $0x4] sm:$0xf]
    %v655 = vld [vmem:[#allocation7 + $0x8] sm:$0xf]
    %v656 = vld [vmem:[#allocation7 + $0xc] sm:$0xf]
    %v657 = vld [vmem:[#allocation7 + $0x10] sm:$0xf]
    %v658 = vld [vmem:[#allocation7 + $0x14] sm:$0xf]
    %v659 = vld [vmem:[#allocation7 + $0x18] sm:$0xf]
    %v660 = vld [vmem:[#allocation7 + $0x1c] sm:$0xf]
    %v661 = vld [vmem:[#allocation7 + $0x20] sm:$0xf]
    %v662 = vld [vmem:[#allocation7 + $0x24] sm:$0xf]
    %v663 = vld [vmem:[#allocation7 + $0x28] sm:$0xf]
    %v664 = vld [vmem:[#allocation7 + $0x2c] sm:$0xf]
    %v665 = vld [vmem:[#allocation7 + $0x30] sm:$0xf]
    %v666 = vld [vmem:[#allocation7 + $0x34] sm:$0xf]
    %v667 = vld [vmem:[#allocation7 + $0x38] sm:$0xf]
    %v668 = vld [vmem:[#allocation7 + $0x3c] sm:$0xf]
    %v669 = vld [vmem:[%s11] sm:$0x1]
    %v671 = vlaneseq
    %v672 = vshrl.u32 %v671, 7
    %v673 = vsub.s32 0, %v672
    %v674 = vrot.slane %v669, %v673
    %v692 = vunpack.c.l.b16 %v653
    %v693 = vunpack.c.l.b16 %v654
    %v694 = vunpack.c.l.b16 %v655
    %v695 = vunpack.c.l.b16 %v656
    %v696 = vunpack.c.l.b16 %v657
    %v697 = vunpack.c.l.b16 %v658
    %v698 = vunpack.c.l.b16 %v659
    %v699 = vunpack.c.l.b16 %v660
    %v700 = vunpack.c.l.b16 %v661
    %v701 = vunpack.c.l.b16 %v662
    %v702 = vunpack.c.l.b16 %v663
    %v703 = vunpack.c.l.b16 %v664
    %v704 = vunpack.c.l.b16 %v665
    %v705 = vunpack.c.l.b16 %v666
    %v706 = vunpack.c.l.b16 %v667
    %v707 = vunpack.c.l.b16 %v668
    %v708 = vpack.c.b16 %v693, %v692
    %v709 = vpack.c.b16 %v695, %v694
    %v710 = vpack.c.b16 %v697, %v696
    %v711 = vpack.c.b16 %v699, %v698
    %v712 = vpack.c.b16 %v701, %v700
    %v713 = vpack.c.b16 %v703, %v702
    %v714 = vpack.c.b16 %v705, %v704
    %v715 = vpack.c.b16 %v707, %v706
    %724 = vmatprep.subr.bf16.mxu0 0
    %725 = vmatpush1.bf16.msra.mxu0 %v708
    %726 = vmatprep.subr.bf16.mxu0 0
    %727 = vmatpush1.bf16.msra.mxu0 %v709
    %728 = vmatprep.subr.bf16.mxu0 0
    %729 = vmatpush1.bf16.msra.mxu0 %v710
    %730 = vmatprep.subr.bf16.mxu0 0
    %731 = vmatpush1.bf16.msra.mxu0 %v711
    %732 = vmatprep.subr.bf16.mxu0 0
    %733 = vmatpush1.bf16.msra.mxu0 %v712
    %734 = vmatprep.subr.bf16.mxu0 0
    %735 = vmatpush1.bf16.msra.mxu0 %v713
    %736 = vmatprep.subr.bf16.mxu0 0
    %737 = vmatpush1.bf16.msra.mxu0 %v714
    %738 = vmatprep.subr.bf16.mxu0 0
    %739 = vmatpush1.bf16.msra.mxu0 %v715
    %740 = vmatprep.subr.bf16.mxu0 0
    %741 = vmatpush1.bf16.msra.mxu0 0
    %742 = vmatprep.subr.bf16.mxu0 0
    %743 = vmatpush1.bf16.msra.mxu0 0
    %744 = vmatprep.subr.bf16.mxu0 0
    %745 = vmatpush1.bf16.msra.mxu0 0
    %746 = vmatprep.subr.bf16.mxu0 0
    %747 = vmatpush1.bf16.msra.mxu0 0
    %748 = vmatprep.subr.bf16.mxu0 0
    %749 = vmatpush1.bf16.msra.mxu0 0
    %750 = vmatprep.subr.bf16.mxu0 0
    %751 = vmatpush1.bf16.msra.mxu0 0
    %752 = vmatprep.subr.bf16.mxu0 0
    %753 = vmatpush1.bf16.msra.mxu0 0
    %754 = vmatprep.subr.bf16.mxu0 0
    %755 = vmatpush1.bf16.msra.mxu0 0
    %756 = vmatprep.mubr.bf16.mxu0 0
    %757 = vmatmul.mubr.bf16.gmra.mrb[0].mxu0 %v652
    %v758 = vpop.f32.mrb[0].mxu0
    %v759 = vadd.f32 %v674, %v758
    %v760 = vpop.f32.mrb[0].mxu0
    %v761 = vpop.f32.mrb[0].mxu0
    %v762 = vadd.f32 %v674, %v761
    %v763 = vpop.f32.mrb[0].mxu0
    %764 = vdwg.mxu0
    %v765 = vmax.f32 %v759, 0.0
    %v766 = vmax.f32 %v762, 0.0
    %v767 = vpack.c.bf16 %v766, %v765
    %v768 = vld [vmem:[#allocation9] sm:$0xf]
    %v769 = vld [vmem:[#allocation9 + $0x4] sm:$0xf]
    %v770 = vld [vmem:[#allocation9 + $0x8] sm:$0xf]
    %v771 = vld [vmem:[#allocation9 + $0xc] sm:$0xf]
    %v772 = vld [vmem:[#allocation9 + $0x10] sm:$0xf]
    %v773 = vld [vmem:[#allocation9 + $0x14] sm:$0xf]
    %v774 = vld [vmem:[#allocation9 + $0x18] sm:$0xf]
    %v775 = vld [vmem:[#allocation9 + $0x1c] sm:$0xf]
    %v776 = vld [vmem:[#allocation9 + $0x20] sm:$0xf]
    %v777 = vld [vmem:[#allocation9 + $0x24] sm:$0xf]
    %v778 = vld [vmem:[#allocation9 + $0x28] sm:$0xf]
    %v779 = vld [vmem:[#allocation9 + $0x2c] sm:$0xf]
    %v780 = vld [vmem:[#allocation9 + $0x30] sm:$0xf]
    %v781 = vld [vmem:[#allocation9 + $0x34] sm:$0xf]
    %v782 = vld [vmem:[#allocation9 + $0x38] sm:$0xf]
    %v783 = vld [vmem:[#allocation9 + $0x3c] sm:$0xf]
    %v784 = vld [vmem:[%s13] sm:$0x1]
    %v786 = vlaneseq
    %v787 = vshrl.u32 %v786, 7
    %v788 = vsub.s32 0, %v787
    %v789 = vrot.slane %v784, %v788
    %v807 = vunpack.c.l.b16 %v768
    %v808 = vunpack.c.l.b16 %v769
    %v809 = vunpack.c.l.b16 %v770
    %v810 = vunpack.c.l.b16 %v771
    %v811 = vunpack.c.l.b16 %v772
    %v812 = vunpack.c.l.b16 %v773
    %v813 = vunpack.c.l.b16 %v774
    %v814 = vunpack.c.l.b16 %v775
    %v815 = vunpack.c.l.b16 %v776
    %v816 = vunpack.c.l.b16 %v777
    %v817 = vunpack.c.l.b16 %v778
    %v818 = vunpack.c.l.b16 %v779
    %v819 = vunpack.c.l.b16 %v780
    %v820 = vunpack.c.l.b16 %v781
    %v821 = vunpack.c.l.b16 %v782
    %v822 = vunpack.c.l.b16 %v783
    %v823 = vpack.c.b16 %v808, %v807
    %v824 = vpack.c.b16 %v810, %v809
    %v825 = vpack.c.b16 %v812, %v811
    %v826 = vpack.c.b16 %v814, %v813
    %v827 = vpack.c.b16 %v816, %v815
    %v828 = vpack.c.b16 %v818, %v817
    %v829 = vpack.c.b16 %v820, %v819
    %v830 = vpack.c.b16 %v822, %v821
    %839 = vmatprep.subr.bf16.mxu0 0
    %840 = vmatpush1.bf16.msra.mxu0 %v823
    %841 = vmatprep.subr.bf16.mxu0 0
    %842 = vmatpush1.bf16.msra.mxu0 %v824
    %843 = vmatprep.subr.bf16.mxu0 0
    %844 = vmatpush1.bf16.msra.mxu0 %v825
    %845 = vmatprep.subr.bf16.mxu0 0
    %846 = vmatpush1.bf16.msra.mxu0 %v826
    %847 = vmatprep.subr.bf16.mxu0 0
    %848 = vmatpush1.bf16.msra.mxu0 %v827
    %849 = vmatprep.subr.bf16.mxu0 0
    %850 = vmatpush1.bf16.msra.mxu0 %v828
    %851 = vmatprep.subr.bf16.mxu0 0
    %852 = vmatpush1.bf16.msra.mxu0 %v829
    %853 = vmatprep.subr.bf16.mxu0 0
    %854 = vmatpush1.bf16.msra.mxu0 %v830
    %855 = vmatprep.subr.bf16.mxu0 0
    %856 = vmatpush1.bf16.msra.mxu0 0
    %857 = vmatprep.subr.bf16.mxu0 0
    %858 = vmatpush1.bf16.msra.mxu0 0
    %859 = vmatprep.subr.bf16.mxu0 0
    %860 = vmatpush1.bf16.msra.mxu0 0
    %861 = vmatprep.subr.bf16.mxu0 0
    %862 = vmatpush1.bf16.msra.mxu0 0
    %863 = vmatprep.subr.bf16.mxu0 0
    %864 = vmatpush1.bf16.msra.mxu0 0
    %865 = vmatprep.subr.bf16.mxu0 0
    %866 = vmatpush1.bf16.msra.mxu0 0
    %867 = vmatprep.subr.bf16.mxu0 0
    %868 = vmatpush1.bf16.msra.mxu0 0
    %869 = vmatprep.subr.bf16.mxu0 0
    %870 = vmatpush1.bf16.msra.mxu0 0
    %871 = vmatprep.mubr.bf16.mxu0 0
    %872 = vmatmul.mubr.bf16.gmra.mrb[0].mxu0 %v767
    %v873 = vpop.f32.mrb[0].mxu0
    %v874 = vadd.f32 %v789, %v873
    %v875 = vpop.f32.mrb[0].mxu0
    %v876 = vpop.f32.mrb[0].mxu0
    %v877 = vadd.f32 %v789, %v876
    %v878 = vpop.f32.mrb[0].mxu0
    %879 = vdwg.mxu0
    %v880 = vmax.f32 %v874, 0.0
    %v881 = vmax.f32 %v877, 0.0
    %v882 = vpack.c.bf16 %v881, %v880
    %v883 = vld [vmem:[#allocation10] sm:$0xf]
    %v884 = vld [vmem:[#allocation10 + $0x4] sm:$0xf]
    %v885 = vld [vmem:[#allocation10 + $0x8] sm:$0xf]
    %v886 = vld [vmem:[#allocation10 + $0xc] sm:$0xf]
    %v887 = vld [vmem:[#allocation10 + $0x10] sm:$0xf]
    %v888 = vld [vmem:[#allocation10 + $0x14] sm:$0xf]
    %v889 = vld [vmem:[#allocation10 + $0x18] sm:$0xf]
    %v890 = vld [vmem:[#allocation10 + $0x1c] sm:$0xf]
    %v891 = vld [vmem:[#allocation10 + $0x20] sm:$0xf]
    %v892 = vld [vmem:[#allocation10 + $0x24] sm:$0xf]
    %v893 = vld [vmem:[#allocation10 + $0x28] sm:$0xf]
    %v894 = vld [vmem:[#allocation10 + $0x2c] sm:$0xf]
    %v895 = vld [vmem:[#allocation10 + $0x30] sm:$0xf]
    %v896 = vld [vmem:[#allocation10 + $0x34] sm:$0xf]
    %v897 = vld [vmem:[#allocation10 + $0x38] sm:$0xf]
    %v898 = vld [vmem:[#allocation10 + $0x3c] sm:$0xf]
    %v899 = vld [vmem:[%s15] sm:$0x1]
    %v901 = vlaneseq
    %v902 = vshrl.u32 %v901, 7
    %v903 = vsub.s32 0, %v902
    %v904 = vrot.slane %v899, %v903
    %v922 = vunpack.c.l.b16 %v883
    %v923 = vunpack.c.l.b16 %v884
    %v924 = vunpack.c.l.b16 %v885
    %v925 = vunpack.c.l.b16 %v886
    %v926 = vunpack.c.l.b16 %v887
    %v927 = vunpack.c.l.b16 %v888
    %v928 = vunpack.c.l.b16 %v889
    %v929 = vunpack.c.l.b16 %v890
    %v930 = vunpack.c.l.b16 %v891
    %v931 = vunpack.c.l.b16 %v892
    %v932 = vunpack.c.l.b16 %v893
    %v933 = vunpack.c.l.b16 %v894
    %v934 = vunpack.c.l.b16 %v895
    %v935 = vunpack.c.l.b16 %v896
    %v936 = vunpack.c.l.b16 %v897
    %v937 = vunpack.c.l.b16 %v898
    %v938 = vpack.c.b16 %v923, %v922
    %v939 = vpack.c.b16 %v925, %v924
    %v940 = vpack.c.b16 %v927, %v926
    %v941 = vpack.c.b16 %v929, %v928
    %v942 = vpack.c.b16 %v931, %v930
    %v943 = vpack.c.b16 %v933, %v932
    %v944 = vpack.c.b16 %v935, %v934
    %v945 = vpack.c.b16 %v937, %v936
    %954 = vmatprep.subr.bf16.mxu0 0
    %955 = vmatpush1.bf16.msra.mxu0 %v938
    %956 = vmatprep.subr.bf16.mxu0 0
    %957 = vmatpush1.bf16.msra.mxu0 %v939
    %958 = vmatprep.subr.bf16.mxu0 0
    %959 = vmatpush1.bf16.msra.mxu0 %v940
    %960 = vmatprep.subr.bf16.mxu0 0
    %961 = vmatpush1.bf16.msra.mxu0 %v941
    %962 = vmatprep.subr.bf16.mxu0 0
    %963 = vmatpush1.bf16.msra.mxu0 %v942
    %964 = vmatprep.subr.bf16.mxu0 0
    %965 = vmatpush1.bf16.msra.mxu0 %v943
    %966 = vmatprep.subr.bf16.mxu0 0
    %967 = vmatpush1.bf16.msra.mxu0 %v944
    %968 = vmatprep.subr.bf16.mxu0 0
    %969 = vmatpush1.bf16.msra.mxu0 %v945
    %970 = vmatprep.subr.bf16.mxu0 0
    %971 = vmatpush1.bf16.msra.mxu0 0
    %972 = vmatprep.subr.bf16.mxu0 0
    %973 = vmatpush1.bf16.msra.mxu0 0
    %974 = vmatprep.subr.bf16.mxu0 0
    %975 = vmatpush1.bf16.msra.mxu0 0
    %976 = vmatprep.subr.bf16.mxu0 0
    %977 = vmatpush1.bf16.msra.mxu0 0
    %978 = vmatprep.subr.bf16.mxu0 0
    %979 = vmatpush1.bf16.msra.mxu0 0
    %980 = vmatprep.subr.bf16.mxu0 0
    %981 = vmatpush1.bf16.msra.mxu0 0
    %982 = vmatprep.subr.bf16.mxu0 0
    %983 = vmatpush1.bf16.msra.mxu0 0
    %984 = vmatprep.subr.bf16.mxu0 0
    %985 = vmatpush1.bf16.msra.mxu0 0
    %986 = vmatprep.mubr.bf16.mxu0 0
    %987 = vmatmul.mubr.bf16.gmra.mrb[0].mxu0 %v882
    %v988 = vpop.f32.mrb[0].mxu0
    %v989 = vadd.f32 %v904, %v988
    %v990 = vpop.f32.mrb[0].mxu0
    %v991 = vpop.f32.mrb[0].mxu0
    %v992 = vadd.f32 %v904, %v991
    %v993 = vpop.f32.mrb[0].mxu0
    %994 = vdwg.mxu0
    %995 = vst [vmem:[%s16] sm:$0xff] %v989
    %996 = vst [vmem:[%s16 + $0x8] sm:$0xff] %v992
    %997 = vst [vmem:[%s17] sm:$0xff] %v632
    %998 = vst [vmem:[%s17 + $0x8] sm:$0xff] %v634
    %999 = vst [vmem:[%s17 + $0x10] sm:$0xff] %v636
    %1000 = vst [vmem:[%s17 + $0x18] sm:$0xff] %v638
    // Predicated region
    $region90: #{_vae_forward_impl.1} parent=1 // pred_check
      _
    $region91: #{_vae_forward_impl.1} parent=1 // pred_check_branch
      %1002 = sbr.rel (0) target = $region93
    $region92: #{_vae_forward_impl.1} parent=1 // pred_region
      _
    $region93: #{_vae_forward_impl.1} parent=1 // pred_fallthru
      _
    // Predicated region
    $region94: #{_vae_forward_impl.1} parent=1 // pred_check
      _
    $region95: #{_vae_forward_impl.1} parent=1 // pred_check_branch
      %1004 = sbr.rel (0) target = $region97
    $region96: #{_vae_forward_impl.1} parent=1 // pred_region
      _
    $region97: #{_vae_forward_impl.1} parent=1 // pred_fallthru
      _
    // Predicated region
    $region98: #{_vae_forward_impl.1} parent=1 // pred_check
      _
    $region99: #{_vae_forward_impl.1} parent=1 // pred_check_branch
      %1006 = sbr.rel (0) target = $region101
    $region100: #{_vae_forward_impl.1} parent=1 // pred_region
      _
    $region101: #{_vae_forward_impl.1} parent=1 // pred_fallthru
      _
    // Predicated region
    $region102: #{_vae_forward_impl.1} parent=1 // pred_check
      _
    $region103: #{_vae_forward_impl.1} parent=1 // pred_check_branch
      %1008 = sbr.rel (0) target = $region105
    $region104: #{_vae_forward_impl.1} parent=1 // pred_region
      _
    $region105: #{_vae_forward_impl.1} parent=1 // pred_fallthru
      _
    %1009 = vsyncpa [#allocation3], 1
    %1010 = vsyncpa [#allocation5], 1
    %1011 = vsyncpa [#allocation8], 1
    %1012 = vsyncpa [#allocation11], 1

// kernel: _vae_forward_impl.1
$region0: #{_vae_forward_impl.1}
  #allocation0 [shape = 'u32[]', space=smem, size = 0x4, offset = 0x4, fixed_abs, tag = 'smem constant byte address 0x4 - core index']
  #allocation1 [shape = 'u32[144,128]{1,0:T(1,128)}', space=vmem, size = 0x12000, scoped, tag = 'internal scratch']
  %s0 = inlined_call_operand.vmem [shape: bf16[16,128], index: 0, kind: input, shape index: {}]
  %s1 = inlined_call_operand.vmem [shape: f32[16,128], index: 1, kind: input, shape index: {}]
  %s2 = inlined_call_operand.hbm [shape: bf16[128,128], index: 2, kind: input, shape index: {}]
  %s3 = inlined_call_operand.vmem [shape: f32[1,128], index: 3, kind: input, shape index: {}]
  %s4 = inlined_call_operand.vmem [shape: bf16[128,128], index: 4, kind: input, shape index: {}]
  %s5 = inlined_call_operand.vmem [shape: f32[1,128], index: 5, kind: input, shape index: {}]
  %s6 = inlined_call_operand.hbm [shape: bf16[128,128], index: 6, kind: input, shape index: {}]
  %s7 = inlined_call_operand.vmem [shape: f32[1,128], index: 7, kind: input, shape index: {}]
  %s8 = inlined_call_operand.hbm [shape: bf16[128,256], index: 8, kind: input, shape index: {}]
  %s9 = inlined_call_operand.vmem [shape: f32[1,256], index: 9, kind: input, shape index: {}]
  %s10 = inlined_call_operand.hbm [shape: bf16[128,128], index: 10, kind: input, shape index: {}]
  %s11 = inlined_call_operand.vmem [shape: f32[1,128], index: 11, kind: input, shape index: {}]
  %s12 = inlined_call_operand.hbm [shape: bf16[128,128], index: 12, kind: input, shape index: {}]
  %s13 = inlined_call_operand.vmem [shape: f32[1,128], index: 13, kind: input, shape index: {}]
  %s14 = inlined_call_operand.hbm [shape: bf16[128,128], index: 14, kind: input, shape index: {}]
  %s15 = inlined_call_operand.vmem [shape: f32[1,128], index: 15, kind: input, shape index: {}]
  %s16 = inlined_call_operand.vmem [shape: f32[16,128], index: 16, kind: output, shape index: {0}]
  %s17 = inlined_call_operand.vmem [shape: f32[16,256], index: 17, kind: output, shape index: {1}]
  %18 = xla_tuple %s16, %s17
  %s19 = sld [smem:[#allocation0]]
  $region106: #{_vae_forward_impl.1} parent=0
    _
  %s21 = ssub.s32 1, %s19
  %s22 = scalar_select 0, %s21, %s19
  $region1: #{_vae_forward_impl.1} parent=0
    #allocation2 [shape = 'u8[32768]{0}', space=vmem, size = 0x8000, scoped, tag = 'input window, operand 2, single buffered']
    #allocation3 [shape = 's32[1]{0}', space=sflag, size = 0x4, scoped, tag = 'scoped memory for _vae_forward_impl.1']
    #allocation4 [shape = 'u8[32768]{0}', space=vmem, size = 0x8000, scoped, tag = 'input window, operand 6, single buffered']
    #allocation5 [shape = 's32[1]{0}', space=sflag, size = 0x4, scoped, tag = 'scoped memory for _vae_forward_impl.1']
    #allocation6 [shape = 'u8[65536]{0}', space=vmem, size = 0x10000, scoped, tag = 'input window, operand 8, single buffered']
    #allocation7 [shape = 'u8[32768]{0}', space=vmem, size = 0x8000, scoped, tag = 'input window, operand 10, single buffered']
    #allocation8 [shape = 's32[1]{0}', space=sflag, size = 0x4, scoped, tag = 'scoped memory for _vae_forward_impl.1']
    #allocation9 [shape = 'u8[32768]{0}', space=vmem, size = 0x8000, scoped, tag = 'input window, operand 12, single buffered']
    #allocation10 [shape = 'u8[32768]{0}', space=vmem, size = 0x8000, scoped, tag = 'input window, operand 14, single buffered']
    #allocation11 [shape = 's32[1]{0}', space=sflag, size = 0x4, scoped, tag = 'scoped memory for _vae_forward_impl.1']
    %23 = vsyncpa [#allocation3], 0
    %24 = vsyncpa [#allocation5], 0
    %25 = vsyncpa [#allocation8], 0
    %26 = vsyncpa [#allocation11], 0
    // Predicated region
    $region2: #{_vae_forward_impl.1} parent=1 // pred_check
      _
    $region3: #{_vae_forward_impl.1} parent=1 // pred_check_branch
      %28 = sbr.rel (0) target = $region5
    $region4: #{_vae_forward_impl.1} parent=1 // pred_region
      _
    $region5: #{_vae_forward_impl.1} parent=1 // pred_fallthru
      _
    // Predicated region
    $region6: #{_vae_forward_impl.1} parent=1 // pred_check
      _
    $region7: #{_vae_forward_impl.1} parent=1 // pred_check_branch
      %30 = sbr.rel (0) target = $region9
    $region8: #{_vae_forward_impl.1} parent=1 // pred_region
      _
    $region9: #{_vae_forward_impl.1} parent=1 // pred_fallthru
      _
    // Predicated region
    $region10: #{_vae_forward_impl.1} parent=1 // pred_check
      _
    $region11: #{_vae_forward_impl.1} parent=1 // pred_check_branch
      %32 = sbr.rel (0) target = $region13
    $region12: #{_vae_forward_impl.1} parent=1 // pred_region
      %s34 = ssub.s32 1024, 1024
      %35 = vsyncadd [#allocation3], %s34
      %s36 = sshll.u32 [#allocation2], 4
      %s37 = int_to_ptr.vmem [resolvable:$true] %s36
      %42 = dma.hbm_to_vmem [thread:$0]  %s2, 1024, %s37, [#allocation3], 64, 64, 4
    $region13: #{_vae_forward_impl.1} parent=1 // pred_fallthru
      _
    // Predicated region
    $region14: #{_vae_forward_impl.1} parent=1 // pred_check
      _
    $region15: #{_vae_forward_impl.1} parent=1 // pred_check_branch
      %44 = sbr.rel (0) target = $region17
    $region16: #{_vae_forward_impl.1} parent=1 // pred_region
      _
    $region17: #{_vae_forward_impl.1} parent=1 // pred_fallthru
      _
    // Predicated region
    $region18: #{_vae_forward_impl.1} parent=1 // pred_check
      _
    $region19: #{_vae_forward_impl.1} parent=1 // pred_check_branch
      %46 = sbr.rel (0) target = $region21
    $region20: #{_vae_forward_impl.1} parent=1 // pred_region
      _
    $region21: #{_vae_forward_impl.1} parent=1 // pred_fallthru
      _
    // Predicated region
    $region22: #{_vae_forward_impl.1} parent=1 // pred_check
      _
    $region23: #{_vae_forward_impl.1} parent=1 // pred_check_branch
      %48 = sbr.rel (0) target = $region25
    $region24: #{_vae_forward_impl.1} parent=1 // pred_region
      _
    $region25: #{_vae_forward_impl.1} parent=1 // pred_fallthru
      _
    // Predicated region
    $region26: #{_vae_forward_impl.1} parent=1 // pred_check
      _
    $region27: #{_vae_forward_impl.1} parent=1 // pred_check_branch
      %50 = sbr.rel (0) target = $region29
    $region28: #{_vae_forward_impl.1} parent=1 // pred_region
      %s52 = ssub.s32 1024, 1024
      %53 = vsyncadd [#allocation5], %s52
      %s54 = sshll.u32 [#allocation4], 4
      %s55 = int_to_ptr.vmem [resolvable:$true] %s54
      %60 = dma.hbm_to_vmem [thread:$0]  %s6, 1024, %s55, [#allocation5], 64, 64, 4
    $region29: #{_vae_forward_impl.1} parent=1 // pred_fallthru
      _
    // Predicated region
    $region30: #{_vae_forward_impl.1} parent=1 // pred_check
      _
    $region31: #{_vae_forward_impl.1} parent=1 // pred_check_branch
      %62 = sbr.rel (0) target = $region33
    $region32: #{_vae_forward_impl.1} parent=1 // pred_region
      _
    $region33: #{_vae_forward_impl.1} parent=1 // pred_fallthru
      _
    // Predicated region
    $region34: #{_vae_forward_impl.1} parent=1 // pred_check
      _
    $region35: #{_vae_forward_impl.1} parent=1 // pred_check_branch
      %64 = sbr.rel (0) target = $region37
    $region36: #{_vae_forward_impl.1} parent=1 // pred_region
      %s66 = ssub.s32 2048, 2048
      %67 = vsyncadd [#allocation5], %s66
      %s68 = sshll.u32 [#allocation6], 4
      %s69 = int_to_ptr.vmem [resolvable:$true] %s68
      %74 = dma.hbm_to_vmem [thread:$0]  %s8, 2048, %s69, [#allocation5], 128, 128, 8
    $region37: #{_vae_forward_impl.1} parent=1 // pred_fallthru
      _
    // Predicated region
    $region38: #{_vae_forward_impl.1} parent=1 // pred_check
      _
    $region39: #{_vae_forward_impl.1} parent=1 // pred_check_branch
      %76 = sbr.rel (0) target = $region41
    $region40: #{_vae_forward_impl.1} parent=1 // pred_region
      _
    $region41: #{_vae_forward_impl.1} parent=1 // pred_fallthru
      _
    // Predicated region
    $region42: #{_vae_forward_impl.1} parent=1 // pred_check
      _
    $region43: #{_vae_forward_impl.1} parent=1 // pred_check_branch
      %78 = sbr.rel (0) target = $region45
    $region44: #{_vae_forward_impl.1} parent=1 // pred_region
      %s80 = ssub.s32 1024, 1024
      %81 = vsyncadd [#allocation8], %s80
      %s82 = sshll.u32 [#allocation7], 4
      %s83 = int_to_ptr.vmem [resolvable:$true] %s82
      %88 = dma.hbm_to_vmem [thread:$0]  %s10, 1024, %s83, [#allocation8], 64, 64, 4
    $region45: #{_vae_forward_impl.1} parent=1 // pred_fallthru
      _
    // Predicated region
    $region46: #{_vae_forward_impl.1} parent=1 // pred_check
      _
    $region47: #{_vae_forward_impl.1} parent=1 // pred_check_branch
      %90 = sbr.rel (0) target = $region49
    $region48: #{_vae_forward_impl.1} parent=1 // pred_region
      _
    $region49: #{_vae_forward_impl.1} parent=1 // pred_fallthru
      _
    // Predicated region
    $region50: #{_vae_forward_impl.1} parent=1 // pred_check
      _
    $region51: #{_vae_forward_impl.1} parent=1 // pred_check_branch
      %92 = sbr.rel (0) target = $region53
    $region52: #{_vae_forward_impl.1} parent=1 // pred_region
      %s94 = ssub.s32 1024, 1024
      %95 = vsyncadd [#allocation8], %s94
      %s96 = sshll.u32 [#allocation9], 4
      %s97 = int_to_ptr.vmem [resolvable:$true] %s96
      %102 = dma.hbm_to_vmem [thread:$0]  %s12, 1024, %s97, [#allocation8], 64, 64, 4
    $region53: #{_vae_forward_impl.1} parent=1 // pred_fallthru
      _
    // Predicated region
    $region54: #{_vae_forward_impl.1} parent=1 // pred_check
      _
    $region55: #{_vae_forward_impl.1} parent=1 // pred_check_branch
      %104 = sbr.rel (0) target = $region57
    $region56: #{_vae_forward_impl.1} parent=1 // pred_region
      _
    $region57: #{_vae_forward_impl.1} parent=1 // pred_fallthru
      _
    // Predicated region
    $region58: #{_vae_forward_impl.1} parent=1 // pred_check
      _
    $region59: #{_vae_forward_impl.1} parent=1 // pred_check_branch
      %106 = sbr.rel (0) target = $region61
    $region60: #{_vae_forward_impl.1} parent=1 // pred_region
      %s108 = ssub.s32 1024, 1024
      %109 = vsyncadd [#allocation11], %s108
      %s110 = sshll.u32 [#allocation10], 4
      %s111 = int_to_ptr.vmem [resolvable:$true] %s110
      %116 = dma.hbm_to_vmem [thread:$0]  %s14, 1024, %s111, [#allocation11], 64, 64, 4
    $region61: #{_vae_forward_impl.1} parent=1 // pred_fallthru
      _
    // Predicated region
    $region62: #{_vae_forward_impl.1} parent=1 // pred_check
      _
    $region63: #{_vae_forward_impl.1} parent=1 // pred_check_branch
      %118 = sbr.rel (0) target = $region65
    $region64: #{_vae_forward_impl.1} parent=1 // pred_region
      _
    $region65: #{_vae_forward_impl.1} parent=1 // pred_fallthru
      _
    // Predicated region
    $region66: #{_vae_forward_impl.1} parent=1 // pred_check
      _
    $region67: #{_vae_forward_impl.1} parent=1 // pred_check_branch
      %120 = sbr.rel (0) target = $region69
    $region68: #{_vae_forward_impl.1} parent=1 // pred_region
      %121 = dma.done [#allocation3], 1024
    $region69: #{_vae_forward_impl.1} parent=1 // pred_fallthru
      _
    // Predicated region
    $region70: #{_vae_forward_impl.1} parent=1 // pred_check
      _
    $region71: #{_vae_forward_impl.1} parent=1 // pred_check_branch
      %123 = sbr.rel (0) target = $region73
    $region72: #{_vae_forward_impl.1} parent=1 // pred_region
      %124 = dma.done [#allocation5], 1024
    $region73: #{_vae_forward_impl.1} parent=1 // pred_fallthru
      _
    // Predicated region
    $region74: #{_vae_forward_impl.1} parent=1 // pred_check
      _
    $region75: #{_vae_forward_impl.1} parent=1 // pred_check_branch
      %126 = sbr.rel (0) target = $region77
    $region76: #{_vae_forward_impl.1} parent=1 // pred_region
      %127 = dma.done [#allocation5], 2048
    $region77: #{_vae_forward_impl.1} parent=1 // pred_fallthru
      _
    // Predicated region
    $region78: #{_vae_forward_impl.1} parent=1 // pred_check
      _
    $region79: #{_vae_forward_impl.1} parent=1 // pred_check_branch
      %129 = sbr.rel (0) target = $region81
    $region80: #{_vae_forward_impl.1} parent=1 // pred_region
      %130 = dma.done [#allocation8], 1024
    $region81: #{_vae_forward_impl.1} parent=1 // pred_fallthru
      _
    // Predicated region
    $region82: #{_vae_forward_impl.1} parent=1 // pred_check
      _
    $region83: #{_vae_forward_impl.1} parent=1 // pred_check_branch
      %132 = sbr.rel (0) target = $region85
    $region84: #{_vae_forward_impl.1} parent=1 // pred_region
      %133 = dma.done [#allocation8], 1024
    $region85: #{_vae_forward_impl.1} parent=1 // pred_fallthru
      _
    // Predicated region
    $region86: #{_vae_forward_impl.1} parent=1 // pred_check
      _
    $region87: #{_vae_forward_impl.1} parent=1 // pred_check_branch
      %135 = sbr.rel (0) target = $region89
    $region88: #{_vae_forward_impl.1} parent=1 // pred_region
      %136 = dma.done [#allocation11], 1024
    $region89: #{_vae_forward_impl.1} parent=1 // pred_fallthru
      _
    %v138 = vld [vmem:[%s0] sm:$0xf]
    %v139 = vld [vmem:[%s0 + $0x4] sm:$0xf]
    %v140 = vld [vmem:[#allocation2] sm:$0xf]
    %v141 = vld [vmem:[#allocation2 + $0x4] sm:$0xf]
    %v142 = vld [vmem:[#allocation2 + $0x8] sm:$0xf]
    %v143 = vld [vmem:[#allocation2 + $0xc] sm:$0xf]
    %v144 = vld [vmem:[#allocation2 + $0x10] sm:$0xf]
    %v145 = vld [vmem:[#allocation2 + $0x14] sm:$0xf]
    %v146 = vld [vmem:[#allocation2 + $0x18] sm:$0xf]
    %v147 = vld [vmem:[#allocation2 + $0x1c] sm:$0xf]
    %v148 = vld [vmem:[#allocation2 + $0x20] sm:$0xf]
    %v149 = vld [vmem:[#allocation2 + $0x24] sm:$0xf]
    %v150 = vld [vmem:[#allocation2 + $0x28] sm:$0xf]
    %v151 = vld [vmem:[#allocation2 + $0x2c] sm:$0xf]
    %v152 = vld [vmem:[#allocation2 + $0x30] sm:$0xf]
    %v153 = vld [vmem:[#allocation2 + $0x34] sm:$0xf]
    %v154 = vld [vmem:[#allocation2 + $0x38] sm:$0xf]
    %v155 = vld [vmem:[#allocation2 + $0x3c] sm:$0xf]
    %v156 = vld [vmem:[%s3] sm:$0x1]
    %v158 = vlaneseq
    %v159 = vshrl.u32 %v158, 7
    %v160 = vsub.s32 0, %v159
    %v161 = vrot.slane %v156, %v160
    %v165 = vunpack.c.l.b16 %v138
    %v166 = vunpack.c.l.b16 %v139
    %v167 = vpack.c.b16 %v166, %v165
    %v185 = vunpack.c.l.b16 %v140
    %v186 = vunpack.c.l.b16 %v141
    %v187 = vunpack.c.l.b16 %v142
    %v188 = vunpack.c.l.b16 %v143
    %v189 = vunpack.c.l.b16 %v144
    %v190 = vunpack.c.l.b16 %v145
    %v191 = vunpack.c.l.b16 %v146
    %v192 = vunpack.c.l.b16 %v147
    %v193 = vunpack.c.l.b16 %v148
    %v194 = vunpack.c.l.b16 %v149
    %v195 = vunpack.c.l.b16 %v150
    %v196 = vunpack.c.l.b16 %v151
    %v197 = vunpack.c.l.b16 %v152
    %v198 = vunpack.c.l.b16 %v153
    %v199 = vunpack.c.l.b16 %v154
    %v200 = vunpack.c.l.b16 %v155
    %v201 = vpack.c.b16 %v186, %v185
    %v202 = vpack.c.b16 %v188, %v187
    %v203 = vpack.c.b16 %v190, %v189
    %v204 = vpack.c.b16 %v192, %v191
    %v205 = vpack.c.b16 %v194, %v193
    %v206 = vpack.c.b16 %v196, %v195
    %v207 = vpack.c.b16 %v198, %v197
    %v208 = vpack.c.b16 %v200, %v199
    %217 = vmatprep.subr.bf16.mxu0 0
    %218 = vmatpush1.bf16.msra.mxu0 %v201
    %219 = vmatprep.subr.bf16.mxu0 0
    %220 = vmatpush1.bf16.msra.mxu0 %v202
    %221 = vmatprep.subr.bf16.mxu0 0
    %222 = vmatpush1.bf16.msra.mxu0 %v203
    %223 = vmatprep.subr.bf16.mxu0 0
    %224 = vmatpush1.bf16.msra.mxu0 %v204
    %225 = vmatprep.subr.bf16.mxu0 0
    %226 = vmatpush1.bf16.msra.mxu0 %v205
    %227 = vmatprep.subr.bf16.mxu0 0
    %228 = vmatpush1.bf16.msra.mxu0 %v206
    %229 = vmatprep.subr.bf16.mxu0 0
    %230 = vmatpush1.bf16.msra.mxu0 %v207
    %231 = vmatprep.subr.bf16.mxu0 0
    %232 = vmatpush1.bf16.msra.mxu0 %v208
    %233 = vmatprep.subr.bf16.mxu0 0
    %234 = vmatpush1.bf16.msra.mxu0 0
    %235 = vmatprep.subr.bf16.mxu0 0
    %236 = vmatpush1.bf16.msra.mxu0 0
    %237 = vmatprep.subr.bf16.mxu0 0
    %238 = vmatpush1.bf16.msra.mxu0 0
    %239 = vmatprep.subr.bf16.mxu0 0
    %240 = vmatpush1.bf16.msra.mxu0 0
    %241 = vmatprep.subr.bf16.mxu0 0
    %242 = vmatpush1.bf16.msra.mxu0 0
    %243 = vmatprep.subr.bf16.mxu0 0
    %244 = vmatpush1.bf16.msra.mxu0 0
    %245 = vmatprep.subr.bf16.mxu0 0
    %246 = vmatpush1.bf16.msra.mxu0 0
    %247 = vmatprep.subr.bf16.mxu0 0
    %248 = vmatpush1.bf16.msra.mxu0 0
    %249 = vmatprep.mubr.bf16.mxu0 0
    %250 = vmatmul.mubr.bf16.gmra.mrb[0].mxu0 %v167
    %v251 = vpop.f32.mrb[0].mxu0
    %v252 = vadd.f32 %v161, %v251
    %v253 = vpop.f32.mrb[0].mxu0
    %v254 = vpop.f32.mrb[0].mxu0
    %v255 = vadd.f32 %v161, %v254
    %v256 = vpop.f32.mrb[0].mxu0
    %257 = vdwg.mxu0
    %v258 = vmax.f32 %v252, 0.0
    %v259 = vmax.f32 %v255, 0.0
    %v260 = vpack.c.bf16 %v259, %v258
    %v261 = vld [vmem:[%s4] sm:$0xf]
    %v262 = vld [vmem:[%s4 + $0x4] sm:$0xf]
    %v263 = vld [vmem:[%s4 + $0x8] sm:$0xf]
    %v264 = vld [vmem:[%s4 + $0xc] sm:$0xf]
    %v265 = vld [vmem:[%s4 + $0x10] sm:$0xf]
    %v266 = vld [vmem:[%s4 + $0x14] sm:$0xf]
    %v267 = vld [vmem:[%s4 + $0x18] sm:$0xf]
    %v268 = vld [vmem:[%s4 + $0x1c] sm:$0xf]
    %v269 = vld [vmem:[%s4 + $0x20] sm:$0xf]
    %v270 = vld [vmem:[%s4 + $0x24] sm:$0xf]
    %v271 = vld [vmem:[%s4 + $0x28] sm:$0xf]
    %v272 = vld [vmem:[%s4 + $0x2c] sm:$0xf]
    %v273 = vld [vmem:[%s4 + $0x30] sm:$0xf]
    %v274 = vld [vmem:[%s4 + $0x34] sm:$0xf]
    %v275 = vld [vmem:[%s4 + $0x38] sm:$0xf]
    %v276 = vld [vmem:[%s4 + $0x3c] sm:$0xf]
    %v277 = vld [vmem:[%s5] sm:$0x1]
    %v279 = vlaneseq
    %v280 = vshrl.u32 %v279, 7
    %v281 = vsub.s32 0, %v280
    %v282 = vrot.slane %v277, %v281
    %v300 = vunpack.c.l.b16 %v261
    %v301 = vunpack.c.l.b16 %v262
    %v302 = vunpack.c.l.b16 %v263
    %v303 = vunpack.c.l.b16 %v264
    %v304 = vunpack.c.l.b16 %v265
    %v305 = vunpack.c.l.b16 %v266
    %v306 = vunpack.c.l.b16 %v267
    %v307 = vunpack.c.l.b16 %v268
    %v308 = vunpack.c.l.b16 %v269
    %v309 = vunpack.c.l.b16 %v270
    %v310 = vunpack.c.l.b16 %v271
    %v311 = vunpack.c.l.b16 %v272
    %v312 = vunpack.c.l.b16 %v273
    %v313 = vunpack.c.l.b16 %v274
    %v314 = vunpack.c.l.b16 %v275
    %v315 = vunpack.c.l.b16 %v276
    %v316 = vpack.c.b16 %v301, %v300
    %v317 = vpack.c.b16 %v303, %v302
    %v318 = vpack.c.b16 %v305, %v304
    %v319 = vpack.c.b16 %v307, %v306
    %v320 = vpack.c.b16 %v309, %v308
    %v321 = vpack.c.b16 %v311, %v310
    %v322 = vpack.c.b16 %v313, %v312
    %v323 = vpack.c.b16 %v315, %v314
    %332 = vmatprep.subr.bf16.mxu0 0
    %333 = vmatpush1.bf16.msra.mxu0 %v316
    %334 = vmatprep.subr.bf16.mxu0 0
    %335 = vmatpush1.bf16.msra.mxu0 %v317
    %336 = vmatprep.subr.bf16.mxu0 0
    %337 = vmatpush1.bf16.msra.mxu0 %v318
    %338 = vmatprep.subr.bf16.mxu0 0
    %339 = vmatpush1.bf16.msra.mxu0 %v319
    %340 = vmatprep.subr.bf16.mxu0 0
    %341 = vmatpush1.bf16.msra.mxu0 %v320
    %342 = vmatprep.subr.bf16.mxu0 0
    %343 = vmatpush1.bf16.msra.mxu0 %v321
    %344 = vmatprep.subr.bf16.mxu0 0
    %345 = vmatpush1.bf16.msra.mxu0 %v322
    %346 = vmatprep.subr.bf16.mxu0 0
    %347 = vmatpush1.bf16.msra.mxu0 %v323
    %348 = vmatprep.subr.bf16.mxu0 0
    %349 = vmatpush1.bf16.msra.mxu0 0
    %350 = vmatprep.subr.bf16.mxu0 0
    %351 = vmatpush1.bf16.msra.mxu0 0
    %352 = vmatprep.subr.bf16.mxu0 0
    %353 = vmatpush1.bf16.msra.mxu0 0
    %354 = vmatprep.subr.bf16.mxu0 0
    %355 = vmatpush1.bf16.msra.mxu0 0
    %356 = vmatprep.subr.bf16.mxu0 0
    %357 = vmatpush1.bf16.msra.mxu0 0
    %358 = vmatprep.subr.bf16.mxu0 0
    %359 = vmatpush1.bf16.msra.mxu0 0
    %360 = vmatprep.subr.bf16.mxu0 0
    %361 = vmatpush1.bf16.msra.mxu0 0
    %362 = vmatprep.subr.bf16.mxu0 0
    %363 = vmatpush1.bf16.msra.mxu0 0
    %364 = vmatprep.mubr.bf16.mxu0 0
    %365 = vmatmul.mubr.bf16.gmra.mrb[0].mxu0 %v260
    %v366 = vpop.f32.mrb[0].mxu0
    %v367 = vadd.f32 %v282, %v366
    %v368 = vpop.f32.mrb[0].mxu0
    %v369 = vpop.f32.mrb[0].mxu0
    %v370 = vadd.f32 %v282, %v369
    %v371 = vpop.f32.mrb[0].mxu0
    %372 = vdwg.mxu0
    %v373 = vmax.f32 %v367, 0.0
    %v374 = vmax.f32 %v370, 0.0
    %v375 = vpack.c.bf16 %v374, %v373
    %v376 = vld [vmem:[#allocation4] sm:$0xf]
    %v377 = vld [vmem:[#allocation4 + $0x4] sm:$0xf]
    %v378 = vld [vmem:[#allocation4 + $0x8] sm:$0xf]
    %v379 = vld [vmem:[#allocation4 + $0xc] sm:$0xf]
    %v380 = vld [vmem:[#allocation4 + $0x10] sm:$0xf]
    %v381 = vld [vmem:[#allocation4 + $0x14] sm:$0xf]
    %v382 = vld [vmem:[#allocation4 + $0x18] sm:$0xf]
    %v383 = vld [vmem:[#allocation4 + $0x1c] sm:$0xf]
    %v384 = vld [vmem:[#allocation4 + $0x20] sm:$0xf]
    %v385 = vld [vmem:[#allocation4 + $0x24] sm:$0xf]
    %v386 = vld [vmem:[#allocation4 + $0x28] sm:$0xf]
    %v387 = vld [vmem:[#allocation4 + $0x2c] sm:$0xf]
    %v388 = vld [vmem:[#allocation4 + $0x30] sm:$0xf]
    %v389 = vld [vmem:[#allocation4 + $0x34] sm:$0xf]
    %v390 = vld [vmem:[#allocation4 + $0x38] sm:$0xf]
    %v391 = vld [vmem:[#allocation4 + $0x3c] sm:$0xf]
    %v392 = vld [vmem:[%s7] sm:$0x1]
    %v394 = vlaneseq
    %v395 = vshrl.u32 %v394, 7
    %v396 = vsub.s32 0, %v395
    %v397 = vrot.slane %v392, %v396
    %v415 = vunpack.c.l.b16 %v376
    %v416 = vunpack.c.l.b16 %v377
    %v417 = vunpack.c.l.b16 %v378
    %v418 = vunpack.c.l.b16 %v379
    %v419 = vunpack.c.l.b16 %v380
    %v420 = vunpack.c.l.b16 %v381
    %v421 = vunpack.c.l.b16 %v382
    %v422 = vunpack.c.l.b16 %v383
    %v423 = vunpack.c.l.b16 %v384
    %v424 = vunpack.c.l.b16 %v385
    %v425 = vunpack.c.l.b16 %v386
    %v426 = vunpack.c.l.b16 %v387
    %v427 = vunpack.c.l.b16 %v388
    %v428 = vunpack.c.l.b16 %v389
    %v429 = vunpack.c.l.b16 %v390
    %v430 = vunpack.c.l.b16 %v391
    %v431 = vpack.c.b16 %v416, %v415
    %v432 = vpack.c.b16 %v418, %v417
    %v433 = vpack.c.b16 %v420, %v419
    %v434 = vpack.c.b16 %v422, %v421
    %v435 = vpack.c.b16 %v424, %v423
    %v436 = vpack.c.b16 %v426, %v425
    %v437 = vpack.c.b16 %v428, %v427
    %v438 = vpack.c.b16 %v430, %v429
    %447 = vmatprep.subr.bf16.mxu0 0
    %448 = vmatpush1.bf16.msra.mxu0 %v431
    %449 = vmatprep.subr.bf16.mxu0 0
    %450 = vmatpush1.bf16.msra.mxu0 %v432
    %451 = vmatprep.subr.bf16.mxu0 0
    %452 = vmatpush1.bf16.msra.mxu0 %v433
    %453 = vmatprep.subr.bf16.mxu0 0
    %454 = vmatpush1.bf16.msra.mxu0 %v434
    %455 = vmatprep.subr.bf16.mxu0 0
    %456 = vmatpush1.bf16.msra.mxu0 %v435
    %457 = vmatprep.subr.bf16.mxu0 0
    %458 = vmatpush1.bf16.msra.mxu0 %v436
    %459 = vmatprep.subr.bf16.mxu0 0
    %460 = vmatpush1.bf16.msra.mxu0 %v437
    %461 = vmatprep.subr.bf16.mxu0 0
    %462 = vmatpush1.bf16.msra.mxu0 %v438
    %463 = vmatprep.subr.bf16.mxu0 0
    %464 = vmatpush1.bf16.msra.mxu0 0
    %465 = vmatprep.subr.bf16.mxu0 0
    %466 = vmatpush1.bf16.msra.mxu0 0
    %467 = vmatprep.subr.bf16.mxu0 0
    %468 = vmatpush1.bf16.msra.mxu0 0
    %469 = vmatprep.subr.bf16.mxu0 0
    %470 = vmatpush1.bf16.msra.mxu0 0
    %471 = vmatprep.subr.bf16.mxu0 0
    %472 = vmatpush1.bf16.msra.mxu0 0
    %473 = vmatprep.subr.bf16.mxu0 0
    %474 = vmatpush1.bf16.msra.mxu0 0
    %475 = vmatprep.subr.bf16.mxu0 0
    %476 = vmatpush1.bf16.msra.mxu0 0
    %477 = vmatprep.subr.bf16.mxu0 0
    %478 = vmatpush1.bf16.msra.mxu0 0
    %479 = vmatprep.mubr.bf16.mxu0 0
    %480 = vmatmul.mubr.bf16.gmra.mrb[0].mxu0 %v375
    %v481 = vpop.f32.mrb[0].mxu0
    %v482 = vadd.f32 %v397, %v481
    %v483 = vpop.f32.mrb[0].mxu0
    %v484 = vpop.f32.mrb[0].mxu0
    %v485 = vadd.f32 %v397, %v484
    %v486 = vpop.f32.mrb[0].mxu0
    %487 = vdwg.mxu0
    %v488 = vpack.c.bf16 %v485, %v482
    %v489 = vld [vmem:[#allocation6] sm:$0xff]
    %v490 = vld [vmem:[#allocation6 + $0x8] sm:$0xff]
    %v491 = vld [vmem:[#allocation6 + $0x10] sm:$0xff]
    %v492 = vld [vmem:[#allocation6 + $0x18] sm:$0xff]
    %v493 = vld [vmem:[#allocation6 + $0x20] sm:$0xff]
    %v494 = vld [vmem:[#allocation6 + $0x28] sm:$0xff]
    %v495 = vld [vmem:[#allocation6 + $0x30] sm:$0xff]
    %v496 = vld [vmem:[#allocation6 + $0x38] sm:$0xff]
    %v497 = vld [vmem:[#allocation6 + $0x40] sm:$0xff]
    %v498 = vld [vmem:[#allocation6 + $0x48] sm:$0xff]
    %v499 = vld [vmem:[#allocation6 + $0x50] sm:$0xff]
    %v500 = vld [vmem:[#allocation6 + $0x58] sm:$0xff]
    %v501 = vld [vmem:[#allocation6 + $0x60] sm:$0xff]
    %v502 = vld [vmem:[#allocation6 + $0x68] sm:$0xff]
    %v503 = vld [vmem:[#allocation6 + $0x70] sm:$0xff]
    %v504 = vld [vmem:[#allocation6 + $0x78] sm:$0xff]
    %v505 = vld [vmem:[%s9] sm:$0x3]
    %v507 = vlaneseq
    %v508 = vshrl.u32 %v507, 7
    %v509 = vsub.s32 0, %v508
    %v510 = vrot.slane %v505, %v509
    %v511 = vlaneseq
    %v512 = vshrl.u32 %v511, 7
    %v513 = vsub.s32 1, %v512
    %v514 = vrot.slane %v505, %v513
    %v533 = vunpack.c.l.b16 %v489
    %v534 = vunpack.c.h.b16 %v489
    %v535 = vunpack.c.l.b16 %v490
    %v536 = vunpack.c.h.b16 %v490
    %v537 = vunpack.c.l.b16 %v491
    %v538 = vunpack.c.h.b16 %v491
    %v539 = vunpack.c.l.b16 %v492
    %v540 = vunpack.c.h.b16 %v492
    %v541 = vunpack.c.l.b16 %v493
    %v542 = vunpack.c.h.b16 %v493
    %v543 = vunpack.c.l.b16 %v494
    %v544 = vunpack.c.h.b16 %v494
    %v545 = vunpack.c.l.b16 %v495
    %v546 = vunpack.c.h.b16 %v495
    %v547 = vunpack.c.l.b16 %v496
    %v548 = vunpack.c.h.b16 %v496
    %v549 = vunpack.c.l.b16 %v497
    %v550 = vunpack.c.h.b16 %v497
    %v551 = vunpack.c.l.b16 %v498
    %v552 = vunpack.c.h.b16 %v498
    %v553 = vunpack.c.l.b16 %v499
    %v554 = vunpack.c.h.b16 %v499
    %v555 = vunpack.c.l.b16 %v500
    %v556 = vunpack.c.h.b16 %v500
    %v557 = vunpack.c.l.b16 %v501
    %v558 = vunpack.c.h.b16 %v501
    %v559 = vunpack.c.l.b16 %v502
    %v560 = vunpack.c.h.b16 %v502
    %v561 = vunpack.c.l.b16 %v503
    %v562 = vunpack.c.h.b16 %v503
    %v563 = vunpack.c.l.b16 %v504
    %v564 = vunpack.c.h.b16 %v504
    %v565 = vpack.c.b16 %v535, %v533
    %v566 = vpack.c.b16 %v536, %v534
    %v567 = vpack.c.b16 %v539, %v537
    %v568 = vpack.c.b16 %v540, %v538
    %v569 = vpack.c.b16 %v543, %v541
    %v570 = vpack.c.b16 %v544, %v542
    %v571 = vpack.c.b16 %v547, %v545
    %v572 = vpack.c.b16 %v548, %v546
    %v573 = vpack.c.b16 %v551, %v549
    %v574 = vpack.c.b16 %v552, %v550
    %v575 = vpack.c.b16 %v555, %v553
    %v576 = vpack.c.b16 %v556, %v554
    %v577 = vpack.c.b16 %v559, %v557
    %v578 = vpack.c.b16 %v560, %v558
    %v579 = vpack.c.b16 %v563, %v561
    %v580 = vpack.c.b16 %v564, %v562
    %597 = vmatprep.subr.bf16.mxu0 %v566
    %598 = vmatpush1.bf16.msra.mxu0 %v565
    %599 = vmatprep.subr.bf16.mxu0 %v568
    %600 = vmatpush1.bf16.msra.mxu0 %v567
    %601 = vmatprep.subr.bf16.mxu0 %v570
    %602 = vmatpush1.bf16.msra.mxu0 %v569
    %603 = vmatprep.subr.bf16.mxu0 %v572
    %604 = vmatpush1.bf16.msra.mxu0 %v571
    %605 = vmatprep.subr.bf16.mxu0 %v574
    %606 = vmatpush1.bf16.msra.mxu0 %v573
    %607 = vmatprep.subr.bf16.mxu0 %v576
    %608 = vmatpush1.bf16.msra.mxu0 %v575
    %609 = vmatprep.subr.bf16.mxu0 %v578
    %610 = vmatpush1.bf16.msra.mxu0 %v577
    %611 = vmatprep.subr.bf16.mxu0 %v580
    %612 = vmatpush1.bf16.msra.mxu0 %v579
    %613 = vmatprep.subr.bf16.mxu0 0
    %614 = vmatpush1.bf16.msra.mxu0 0
    %615 = vmatprep.subr.bf16.mxu0 0
    %616 = vmatpush1.bf16.msra.mxu0 0
    %617 = vmatprep.subr.bf16.mxu0 0
    %618 = vmatpush1.bf16.msra.mxu0 0
    %619 = vmatprep.subr.bf16.mxu0 0
    %620 = vmatpush1.bf16.msra.mxu0 0
    %621 = vmatprep.subr.bf16.mxu0 0
    %622 = vmatpush1.bf16.msra.mxu0 0
    %623 = vmatprep.subr.bf16.mxu0 0
    %624 = vmatpush1.bf16.msra.mxu0 0
    %625 = vmatprep.subr.bf16.mxu0 0
    %626 = vmatpush1.bf16.msra.mxu0 0
    %627 = vmatprep.subr.bf16.mxu0 0
    %628 = vmatpush1.bf16.msra.mxu0 0
    %629 = vmatprep.mubr.bf16.mxu0 0
    %630 = vmatmul.mubr.bf16.gmra.mrb[0].mxu0 %v488
    %v631 = vpop.f32.mrb[0].mxu0
    %v632 = vadd.f32 %v510, %v631
    %v633 = vpop.f32.mrb[0].mxu0
    %v634 = vadd.f32 %v514, %v633
    %v635 = vpop.f32.mrb[0].mxu0
    %v636 = vadd.f32 %v510, %v635
    %v637 = vpop.f32.mrb[0].mxu0
    %v638 = vadd.f32 %v514, %v637
    %639 = vdwg.mxu0
    %v640 = vld [vmem:[%s1] sm:$0xff]
    %v641 = vld [vmem:[%s1 + $0x8] sm:$0xff]
    %v642 = vmul.f32 %v634, 0.5
    %v643 = vmul.f32 %v638, 0.5
    %v644 = vmul.f32 %v642, 1.442695
    %v645 = vpow.pop %v644
    %v646 = vmul.f32 %v643, 1.442695
    %v647 = vpow.pop %v646
    %v648 = vmul.f32 %v640, %v645
    %v649 = vmul.f32 %v641, %v647
    %v650 = vadd.f32 %v632, %v648
    %v651 = vadd.f32 %v636, %v649
    %v652 = vpack.c.bf16 %v651, %v650
    %v653 = vld [vmem:[#allocation7] sm:$0xf]
    %v654 = vld [vmem:[#allocation7 + $0x4] sm:$0xf]
    %v655 = vld [vmem:[#allocation7 + $0x8] sm:$0xf]
    %v656 = vld [vmem:[#allocation7 + $0xc] sm:$0xf]
    %v657 = vld [vmem:[#allocation7 + $0x10] sm:$0xf]
    %v658 = vld [vmem:[#allocation7 + $0x14] sm:$0xf]
    %v659 = vld [vmem:[#allocation7 + $0x18] sm:$0xf]
    %v660 = vld [vmem:[#allocation7 + $0x1c] sm:$0xf]
    %v661 = vld [vmem:[#allocation7 + $0x20] sm:$0xf]
    %v662 = vld [vmem:[#allocation7 + $0x24] sm:$0xf]
    %v663 = vld [vmem:[#allocation7 + $0x28] sm:$0xf]
    %v664 = vld [vmem:[#allocation7 + $0x2c] sm:$0xf]
    %v665 = vld [vmem:[#allocation7 + $0x30] sm:$0xf]
    %v666 = vld [vmem:[#allocation7 + $0x34] sm:$0xf]
    %v667 = vld [vmem:[#allocation7 + $0x38] sm:$0xf]
    %v668 = vld [vmem:[#allocation7 + $0x3c] sm:$0xf]
    %v669 = vld [vmem:[%s11] sm:$0x1]
    %v671 = vlaneseq
    %v672 = vshrl.u32 %v671, 7
    %v673 = vsub.s32 0, %v672
    %v674 = vrot.slane %v669, %v673
    %v692 = vunpack.c.l.b16 %v653
    %v693 = vunpack.c.l.b16 %v654
    %v694 = vunpack.c.l.b16 %v655
    %v695 = vunpack.c.l.b16 %v656
    %v696 = vunpack.c.l.b16 %v657
    %v697 = vunpack.c.l.b16 %v658
    %v698 = vunpack.c.l.b16 %v659
    %v699 = vunpack.c.l.b16 %v660
    %v700 = vunpack.c.l.b16 %v661
    %v701 = vunpack.c.l.b16 %v662
    %v702 = vunpack.c.l.b16 %v663
    %v703 = vunpack.c.l.b16 %v664
    %v704 = vunpack.c.l.b16 %v665
    %v705 = vunpack.c.l.b16 %v666
    %v706 = vunpack.c.l.b16 %v667
    %v707 = vunpack.c.l.b16 %v668
    %v708 = vpack.c.b16 %v693, %v692
    %v709 = vpack.c.b16 %v695, %v694
    %v710 = vpack.c.b16 %v697, %v696
    %v711 = vpack.c.b16 %v699, %v698
    %v712 = vpack.c.b16 %v701, %v700
    %v713 = vpack.c.b16 %v703, %v702
    %v714 = vpack.c.b16 %v705, %v704
    %v715 = vpack.c.b16 %v707, %v706
    %724 = vmatprep.subr.bf16.mxu0 0
    %725 = vmatpush1.bf16.msra.mxu0 %v708
    %726 = vmatprep.subr.bf16.mxu0 0
    %727 = vmatpush1.bf16.msra.mxu0 %v709
    %728 = vmatprep.subr.bf16.mxu0 0
    %729 = vmatpush1.bf16.msra.mxu0 %v710
    %730 = vmatprep.subr.bf16.mxu0 0
    %731 = vmatpush1.bf16.msra.mxu0 %v711
    %732 = vmatprep.subr.bf16.mxu0 0
    %733 = vmatpush1.bf16.msra.mxu0 %v712
    %734 = vmatprep.subr.bf16.mxu0 0
    %735 = vmatpush1.bf16.msra.mxu0 %v713
    %736 = vmatprep.subr.bf16.mxu0 0
    %737 = vmatpush1.bf16.msra.mxu0 %v714
    %738 = vmatprep.subr.bf16.mxu0 0
    %739 = vmatpush1.bf16.msra.mxu0 %v715
    %740 = vmatprep.subr.bf16.mxu0 0
    %741 = vmatpush1.bf16.msra.mxu0 0
    %742 = vmatprep.subr.bf16.mxu0 0
    %743 = vmatpush1.bf16.msra.mxu0 0
    %744 = vmatprep.subr.bf16.mxu0 0
    %745 = vmatpush1.bf16.msra.mxu0 0
    %746 = vmatprep.subr.bf16.mxu0 0
    %747 = vmatpush1.bf16.msra.mxu0 0
    %748 = vmatprep.subr.bf16.mxu0 0
    %749 = vmatpush1.bf16.msra.mxu0 0
    %750 = vmatprep.subr.bf16.mxu0 0
    %751 = vmatpush1.bf16.msra.mxu0 0
    %752 = vmatprep.subr.bf16.mxu0 0
    %753 = vmatpush1.bf16.msra.mxu0 0
    %754 = vmatprep.subr.bf16.mxu0 0
    %755 = vmatpush1.bf16.msra.mxu0 0
    %756 = vmatprep.mubr.bf16.mxu0 0
    %757 = vmatmul.mubr.bf16.gmra.mrb[0].mxu0 %v652
    %v758 = vpop.f32.mrb[0].mxu0
    %v759 = vadd.f32 %v674, %v758
    %v760 = vpop.f32.mrb[0].mxu0
    %v761 = vpop.f32.mrb[0].mxu0
    %v762 = vadd.f32 %v674, %v761
    %v763 = vpop.f32.mrb[0].mxu0
    %764 = vdwg.mxu0
    %v765 = vmax.f32 %v759, 0.0
    %v766 = vmax.f32 %v762, 0.0
    %v767 = vpack.c.bf16 %v766, %v765
    %v768 = vld [vmem:[#allocation9] sm:$0xf]
    %v769 = vld [vmem:[#allocation9 + $0x4] sm:$0xf]
    %v770 = vld [vmem:[#allocation9 + $0x8] sm:$0xf]
    %v771 = vld [vmem:[#allocation9 + $0xc] sm:$0xf]
    %v772 = vld [vmem:[#allocation9 + $0x10] sm:$0xf]
    %v773 = vld [vmem:[#allocation9 + $0x14] sm:$0xf]
    %v774 = vld [vmem:[#allocation9 + $0x18] sm:$0xf]
    %v775 = vld [vmem:[#allocation9 + $0x1c] sm:$0xf]
    %v776 = vld [vmem:[#allocation9 + $0x20] sm:$0xf]
    %v777 = vld [vmem:[#allocation9 + $0x24] sm:$0xf]
    %v778 = vld [vmem:[#allocation9 + $0x28] sm:$0xf]
    %v779 = vld [vmem:[#allocation9 + $0x2c] sm:$0xf]
    %v780 = vld [vmem:[#allocation9 + $0x30] sm:$0xf]
    %v781 = vld [vmem:[#allocation9 + $0x34] sm:$0xf]
    %v782 = vld [vmem:[#allocation9 + $0x38] sm:$0xf]
    %v783 = vld [vmem:[#allocation9 + $0x3c] sm:$0xf]
    %v784 = vld [vmem:[%s13] sm:$0x1]
    %v786 = vlaneseq
    %v787 = vshrl.u32 %v786, 7
    %v788 = vsub.s32 0, %v787
    %v789 = vrot.slane %v784, %v788
    %v807 = vunpack.c.l.b16 %v768
    %v808 = vunpack.c.l.b16 %v769
    %v809 = vunpack.c.l.b16 %v770
    %v810 = vunpack.c.l.b16 %v771
    %v811 = vunpack.c.l.b16 %v772
    %v812 = vunpack.c.l.b16 %v773
    %v813 = vunpack.c.l.b16 %v774
    %v814 = vunpack.c.l.b16 %v775
    %v815 = vunpack.c.l.b16 %v776
    %v816 = vunpack.c.l.b16 %v777
    %v817 = vunpack.c.l.b16 %v778
    %v818 = vunpack.c.l.b16 %v779
    %v819 = vunpack.c.l.b16 %v780
    %v820 = vunpack.c.l.b16 %v781
    %v821 = vunpack.c.l.b16 %v782
    %v822 = vunpack.c.l.b16 %v783
    %v823 = vpack.c.b16 %v808, %v807
    %v824 = vpack.c.b16 %v810, %v809
    %v825 = vpack.c.b16 %v812, %v811
    %v826 = vpack.c.b16 %v814, %v813
    %v827 = vpack.c.b16 %v816, %v815
    %v828 = vpack.c.b16 %v818, %v817
    %v829 = vpack.c.b16 %v820, %v819
    %v830 = vpack.c.b16 %v822, %v821
    %839 = vmatprep.subr.bf16.mxu0 0
    %840 = vmatpush1.bf16.msra.mxu0 %v823
    %841 = vmatprep.subr.bf16.mxu0 0
    %842 = vmatpush1.bf16.msra.mxu0 %v824
    %843 = vmatprep.subr.bf16.mxu0 0
    %844 = vmatpush1.bf16.msra.mxu0 %v825
    %845 = vmatprep.subr.bf16.mxu0 0
    %846 = vmatpush1.bf16.msra.mxu0 %v826
    %847 = vmatprep.subr.bf16.mxu0 0
    %848 = vmatpush1.bf16.msra.mxu0 %v827
    %849 = vmatprep.subr.bf16.mxu0 0
    %850 = vmatpush1.bf16.msra.mxu0 %v828
    %851 = vmatprep.subr.bf16.mxu0 0
    %852 = vmatpush1.bf16.msra.mxu0 %v829
    %853 = vmatprep.subr.bf16.mxu0 0
    %854 = vmatpush1.bf16.msra.mxu0 %v830
    %855 = vmatprep.subr.bf16.mxu0 0
    %856 = vmatpush1.bf16.msra.mxu0 0
    %857 = vmatprep.subr.bf16.mxu0 0
    %858 = vmatpush1.bf16.msra.mxu0 0
    %859 = vmatprep.subr.bf16.mxu0 0
    %860 = vmatpush1.bf16.msra.mxu0 0
    %861 = vmatprep.subr.bf16.mxu0 0
    %862 = vmatpush1.bf16.msra.mxu0 0
    %863 = vmatprep.subr.bf16.mxu0 0
    %864 = vmatpush1.bf16.msra.mxu0 0
    %865 = vmatprep.subr.bf16.mxu0 0
    %866 = vmatpush1.bf16.msra.mxu0 0
    %867 = vmatprep.subr.bf16.mxu0 0
    %868 = vmatpush1.bf16.msra.mxu0 0
    %869 = vmatprep.subr.bf16.mxu0 0
    %870 = vmatpush1.bf16.msra.mxu0 0
    %871 = vmatprep.mubr.bf16.mxu0 0
    %872 = vmatmul.mubr.bf16.gmra.mrb[0].mxu0 %v767
    %v873 = vpop.f32.mrb[0].mxu0
    %v874 = vadd.f32 %v789, %v873
    %v875 = vpop.f32.mrb[0].mxu0
    %v876 = vpop.f32.mrb[0].mxu0
    %v877 = vadd.f32 %v789, %v876
    %v878 = vpop.f32.mrb[0].mxu0
    %879 = vdwg.mxu0
    %v880 = vmax.f32 %v874, 0.0
    %v881 = vmax.f32 %v877, 0.0
    %v882 = vpack.c.bf16 %v881, %v880
    %v883 = vld [vmem:[#allocation10] sm:$0xf]
    %v884 = vld [vmem:[#allocation10 + $0x4] sm:$0xf]
    %v885 = vld [vmem:[#allocation10 + $0x8] sm:$0xf]
    %v886 = vld [vmem:[#allocation10 + $0xc] sm:$0xf]
    %v887 = vld [vmem:[#allocation10 + $0x10] sm:$0xf]
    %v888 = vld [vmem:[#allocation10 + $0x14] sm:$0xf]
    %v889 = vld [vmem:[#allocation10 + $0x18] sm:$0xf]
    %v890 = vld [vmem:[#allocation10 + $0x1c] sm:$0xf]
    %v891 = vld [vmem:[#allocation10 + $0x20] sm:$0xf]
    %v892 = vld [vmem:[#allocation10 + $0x24] sm:$0xf]
    %v893 = vld [vmem:[#allocation10 + $0x28] sm:$0xf]
    %v894 = vld [vmem:[#allocation10 + $0x2c] sm:$0xf]
    %v895 = vld [vmem:[#allocation10 + $0x30] sm:$0xf]
    %v896 = vld [vmem:[#allocation10 + $0x34] sm:$0xf]
    %v897 = vld [vmem:[#allocation10 + $0x38] sm:$0xf]
    %v898 = vld [vmem:[#allocation10 + $0x3c] sm:$0xf]
    %v899 = vld [vmem:[%s15] sm:$0x1]
    %v901 = vlaneseq
    %v902 = vshrl.u32 %v901, 7
    %v903 = vsub.s32 0, %v902
    %v904 = vrot.slane %v899, %v903
    %v922 = vunpack.c.l.b16 %v883
    %v923 = vunpack.c.l.b16 %v884
    %v924 = vunpack.c.l.b16 %v885
    %v925 = vunpack.c.l.b16 %v886
    %v926 = vunpack.c.l.b16 %v887
    %v927 = vunpack.c.l.b16 %v888
    %v928 = vunpack.c.l.b16 %v889
    %v929 = vunpack.c.l.b16 %v890
    %v930 = vunpack.c.l.b16 %v891
    %v931 = vunpack.c.l.b16 %v892
    %v932 = vunpack.c.l.b16 %v893
    %v933 = vunpack.c.l.b16 %v894
    %v934 = vunpack.c.l.b16 %v895
    %v935 = vunpack.c.l.b16 %v896
    %v936 = vunpack.c.l.b16 %v897
    %v937 = vunpack.c.l.b16 %v898
    %v938 = vpack.c.b16 %v923, %v922
    %v939 = vpack.c.b16 %v925, %v924
    %v940 = vpack.c.b16 %v927, %v926
    %v941 = vpack.c.b16 %v929, %v928
    %v942 = vpack.c.b16 %v931, %v930
    %v943 = vpack.c.b16 %v933, %v932
    %v944 = vpack.c.b16 %v935, %v934
    %v945 = vpack.c.b16 %v937, %v936
    %954 = vmatprep.subr.bf16.mxu0 0
    %955 = vmatpush1.bf16.msra.mxu0 %v938
    %956 = vmatprep.subr.bf16.mxu0 0
    %957 = vmatpush1.bf16.msra.mxu0 %v939
    %958 = vmatprep.subr.bf16.mxu0 0
    %959 = vmatpush1.bf16.msra.mxu0 %v940
    %960 = vmatprep.subr.bf16.mxu0 0
    %961 = vmatpush1.bf16.msra.mxu0 %v941
    %962 = vmatprep.subr.bf16.mxu0 0
    %963 = vmatpush1.bf16.msra.mxu0 %v942
    %964 = vmatprep.subr.bf16.mxu0 0
    %965 = vmatpush1.bf16.msra.mxu0 %v943
    %966 = vmatprep.subr.bf16.mxu0 0
    %967 = vmatpush1.bf16.msra.mxu0 %v944
    %968 = vmatprep.subr.bf16.mxu0 0
    %969 = vmatpush1.bf16.msra.mxu0 %v945
    %970 = vmatprep.subr.bf16.mxu0 0
    %971 = vmatpush1.bf16.msra.mxu0 0
    %972 = vmatprep.subr.bf16.mxu0 0
    %973 = vmatpush1.bf16.msra.mxu0 0
    %974 = vmatprep.subr.bf16.mxu0 0
    %975 = vmatpush1.bf16.msra.mxu0 0
    %976 = vmatprep.subr.bf16.mxu0 0
    %977 = vmatpush1.bf16.msra.mxu0 0
    %978 = vmatprep.subr.bf16.mxu0 0
    %979 = vmatpush1.bf16.msra.mxu0 0
    %980 = vmatprep.subr.bf16.mxu0 0
    %981 = vmatpush1.bf16.msra.mxu0 0
    %982 = vmatprep.subr.bf16.mxu0 0
    %983 = vmatpush1.bf16.msra.mxu0 0
    %984 = vmatprep.subr.bf16.mxu0 0
    %985 = vmatpush1.bf16.msra.mxu0 0
    %986 = vmatprep.mubr.bf16.mxu0 0
    %987 = vmatmul.mubr.bf16.gmra.mrb[0].mxu0 %v882
    %v988 = vpop.f32.mrb[0].mxu0
    %v989 = vadd.f32 %v904, %v988
    %v990 = vpop.f32.mrb[0].mxu0
    %v991 = vpop.f32.mrb[0].mxu0
    %v992 = vadd.f32 %v904, %v991
    %v993 = vpop.f32.mrb[0].mxu0
    %994 = vdwg.mxu0
    %995 = vst [vmem:[%s16] sm:$0xff] %v989
    %996 = vst [vmem:[%s16 + $0x8] sm:$0xff] %v992
    %997 = vst [vmem:[%s17] sm:$0xff] %v632
    %998 = vst [vmem:[%s17 + $0x8] sm:$0xff] %v634
    %999 = vst [vmem:[%s17 + $0x10] sm:$0xff] %v636
    %1000 = vst [vmem:[%s17 + $0x18] sm:$0xff] %v638
    // Predicated region
    $region90: #{_vae_forward_impl.1} parent=1 // pred_check
      _
    $region91: #{_vae_forward_impl.1} parent=1 // pred_check_branch
      %1002 = sbr.rel (0) target = $region93
    $region92: #{_vae_forward_impl.1} parent=1 // pred_region
      _
    $region93: #{_vae_forward_impl.1} parent=1 // pred_fallthru
      _
    // Predicated region
    $region94: #{_vae_forward_impl.1} parent=1 // pred_check
      _
    $region95: #{_vae_forward_impl.1} parent=1 // pred_check_branch
      %1004 = sbr.rel (0) target = $region97
    $region96: #{_vae_forward_impl.1} parent=1 // pred_region
      _
    $region97: #{_vae_forward_impl.1} parent=1 // pred_fallthru
      _
    // Predicated region
    $region98: #{_vae_forward_impl.1} parent=1 // pred_check
      _
    $region99: #{_vae_forward_impl.1} parent=1 // pred_check_branch
      %1006 = sbr.rel (0) target = $region101
    $region100: #{_vae_forward_impl.1} parent=1 // pred_region
      _
    $region101: #{_vae_forward_impl.1} parent=1 // pred_fallthru
      _
    // Predicated region
    $region102: #{_vae_forward_impl.1} parent=1 // pred_check
      _
    $region103: #{_vae_forward_impl.1} parent=1 // pred_check_branch
      %1008 = sbr.rel (0) target = $region105
    $region104: #{_vae_forward_impl.1} parent=1 // pred_region
      _
    $region105: #{_vae_forward_impl.1} parent=1 // pred_fallthru
      _
    %1009 = vsyncpa [#allocation3], 1
    %1010 = vsyncpa [#allocation5], 1
    %1011 = vsyncpa [#allocation8], 1
    %1012 = vsyncpa [#allocation11], 1

</llo_original>
